<compile_context>
chip_gen: v7x
topology: tpu7x:2x2x1
jax: 0.10.0
libtpu: 0.0.40
codegen_flags: <defaults>
</compile_context>

<pallas_src>
import functools

import jax
import jax.numpy as jnp
from jax import lax
from jax.experimental import pallas as pl
from jax.experimental.pallas import tpu as pltpu


# -----------------------------------------------------------------------------
# Fused kernel: all LSTM layers + output Linear in one pallas_call.
# -----------------------------------------------------------------------------
def _fused_predictor_kernel(x_ref, *rest, num_layers, seq_len, batch_pad):
    # x_ref:                [T*Bp, D_in]       time-major, batch padded, flattened
    # per layer l (3 refs): w_ih_g [4, D_l, H], w_hh_g [4, H, H], b_g [4, 1, H]
    # w_out_ref:            [H, 1]
    # b_out_ref:            [1, 1]
    # out_ref:              [Bp, 1]
    # scratch: gx_scr [4, T*Bp, H], hs_scr [T*Bp, H], h_scr [Bp, H], c_scr [Bp, H]
    L, T, Bp = num_layers, seq_len, batch_pad

    layer_refs = rest[: 3 * L]
    w_out_ref = rest[3 * L]
    b_out_ref = rest[3 * L + 1]
    out_ref = rest[3 * L + 2]
    gx_scr, hs_scr, h_scr, c_scr = rest[3 * L + 3:]

    for l in range(L):
        w_ih_ref = layer_refs[3 * l]      # [4, D_l, H]
        w_hh_ref = layer_refs[3 * l + 1]  # [4, H, H]
        b_ref = layer_refs[3 * l + 2]     # [4, 1, H]
        last_layer = (l == L - 1)

        # ---- Batched input projection: one big MXU matmul per gate, done
        #      once per layer, off the serial critical path.  Bias folded in
        #      here (broadcast once, not per timestep).
        src = x_ref[...] if l == 0 else hs_scr[...]        # [T*Bp, D_l]
        for k in range(4):
            gx_scr[k] = (
                jnp.dot(src, w_ih_ref[k], preferred_element_type=jnp.float32)
                + b_ref[k]
            )

        # Loop-invariant recurrent weights (loaded once per layer).
        whh = [w_hh_ref[k] for k in range(4)]

        h_scr[...] = jnp.zeros_like(h_scr)  # h0 = 0
        c_scr[...] = jnp.zeros_like(c_scr)  # c0 = 0

        def step(t, carry, whh=whh, last_layer=last_layer):
            row = pl.multiple_of(t * Bp, Bp)        # sublane-aligned (Bp % 8 == 0)
            h_prev = h_scr[...]                     # [Bp, H]
            c_prev = c_scr[...]                     # [Bp, H]

            # Per-step work: 4 small h @ W_hh matmuls + elementwise only.
            g = [
                gx_scr[k, pl.ds(row, Bp), :]
                + jnp.dot(h_prev, whh[k], preferred_element_type=jnp.float32)
                for k in range(4)
            ]
            # PyTorch gate order: input, forget, cell(g), output
            i_g = jax.nn.sigmoid(g[0])
            f_g = jax.nn.sigmoid(g[1])
            g_g = jnp.tanh(g[2])
            o_g = jax.nn.sigmoid(g[3])

            c_new = f_g * c_prev + i_g * g_g
            h_new = o_g * jnp.tanh(c_new)

            c_scr[...] = c_new
            h_scr[...] = h_new
            if not last_layer:
                # Feed the next layer through VMEM (no HBM round-trip).
                hs_scr[pl.ds(row, Bp), :] = h_new
            return carry

        lax.fori_loop(0, T, step, 0)

    # ---- Fused output projection: h at t=T-1 is still live in h_scr.
    out_ref[...] = (
        jnp.dot(h_scr[...], w_out_ref[...], preferred_element_type=jnp.float32)
        + b_out_ref[...]
    )


# -----------------------------------------------------------------------------
# Wrapper
# -----------------------------------------------------------------------------
@jax.jit
def predictor_forward(x, params):
    """x: [B, T, input_size] (batch_first, PyTorch convention) -> [B, 1]."""
    B, T, D = x.shape
    layers = params["layers"]
    L = len(layers)
    H = layers[0]["w_hh_g"].shape[-1]
    Bp = max(8, ((B + 7) // 8) * 8)  # pad batch to a sublane multiple

    x_tm = jnp.transpose(x, (1, 0, 2))                       # [T, B, D]
    x_tm = jnp.pad(x_tm, ((0, 0), (0, Bp - B), (0, 0)))      # [T, Bp, D]
    x2d = x_tm.reshape(T * Bp, D)                            # [T*Bp, D]

    flat_w = []
    for lp in layers:
        flat_w += [lp["w_ih_g"], lp["w_hh_g"], lp["b_g"]]

    kernel = functools.partial(
        _fused_predictor_kernel, num_layers=L, seq_len=T, batch_pad=Bp
    )
    n_inputs = 1 + 3 * L + 2

    out = pl.pallas_call(
        kernel,
        out_shape=jax.ShapeDtypeStruct((Bp, 1), jnp.float32),
        in_specs=[pl.BlockSpec(memory_space=pltpu.MemorySpace.VMEM)] * n_inputs,
        out_specs=pl.BlockSpec(memory_space=pltpu.MemorySpace.VMEM),
        scratch_shapes=[
            pltpu.VMEM((4, T * Bp, H), jnp.float32),  # batched gate projections
            pltpu.VMEM((T * Bp, H), jnp.float32),     # inter-layer hidden sequence
            pltpu.VMEM((Bp, H), jnp.float32),         # h state
            pltpu.VMEM((Bp, H), jnp.float32),         # c state
        ],
        compiler_params=pltpu.CompilerParams(
            # Raise the scoped VMEM limit above the 16/32 MiB defaults while
            # staying below v7x's 64 MiB physical.
            vmem_limit_bytes=48 * 1024 * 1024,
        ),
    )(x2d, *flat_w, params["w_out_t"], params["b_out"])
    return out[:B]


# -----------------------------------------------------------------------------
# Parameter construction (PyTorch-style uniform(-1/sqrt(H), 1/sqrt(H))),
# stored stacked per gate for lane-aligned gate math.
# -----------------------------------------------------------------------------
def init_params(key, input_size, hidden_size, num_layers):
    H = hidden_size
    bound = 1.0 / (H ** 0.5)
    layers = []
    for layer in range(num_layers):
        d_in = input_size if layer == 0 else H
        key, k1, k2, k3, k4 = jax.random.split(key, 5)
        w_ih = jax.random.uniform(k1, (4 * H, d_in), jnp.float32, -bound, bound)
        w_hh = jax.random.uniform(k2, (4 * H, H), jnp.float32, -bound, bound)
        b_ih = jax.random.uniform(k3, (4 * H,), jnp.float32, -bound, bound)
        b_hh = jax.random.uniform(k4, (4 * H,), jnp.float32, -bound, bound)
        layers.append(
            {
                # [4, d_in, H]: gate-stacked, pre-transposed W_ih
                "w_ih_g": jnp.transpose(w_ih.reshape(4, H, d_in), (0, 2, 1)),
                # [4, H, H]: gate-stacked, pre-transposed W_hh
                "w_hh_g": jnp.transpose(w_hh.reshape(4, H, H), (0, 2, 1)),
                # [4, 1, H]: combined bias per gate
                "b_g": (b_ih + b_hh).reshape(4, 1, H),
            }
        )
    key, k5, k6 = jax.random.split(key, 3)
    w_out = jax.random.uniform(k5, (1, H), jnp.float32, -bound, bound)
    b_out = jax.random.uniform(k6, (1,), jnp.float32, -bound, bound)
    return {"layers": layers, "w_out_t": w_out.T, "b_out": b_out.reshape(1, 1)}


# -----------------------------------------------------------------------------
# Pure-JAX reference (mirrors torch.nn.LSTM math) for correctness check.
# -----------------------------------------------------------------------------
def reference_forward(x, params):
    seq = jnp.transpose(x, (1, 0, 2))  # [T, B, D]
    for lp in params["layers"]:
        wih, whh, b = lp["w_ih_g"], lp["w_hh_g"], lp["b_g"]
        B = seq.shape[1]
        H = whh.shape[-1]

        def step(carry, x_t, wih=wih, whh=whh, b=b, H=H):
            h, c = carry
            g = [x_t @ wih[k] + h @ whh[k] + b[k] for k in range(4)]
            i_g = jax.nn.sigmoid(g[0])
            f_g = jax.nn.sigmoid(g[1])
            g_g = jnp.tanh(g[2])
            o_g = jax.nn.sigmoid(g[3])
            c_new = f_g * c + i_g * g_g
            h_new = o_g * jnp.tanh(c_new)
            return (h_new, c_new), h_new

        init = (jnp.zeros((B, H), jnp.float32), jnp.zeros((B, H), jnp.float32))
        (_, _), seq = lax.scan(step, init, seq)
    return seq[-1] @ params["w_out_t"] + params["b_out"]


if __name__ == "__main__":
    batch = 2
    seq_len = 8
    input_size = 16
    hidden_size = 32
    num_layers = 2

    key = jax.random.PRNGKey(0)
    key, xkey = jax.random.split(key)
    x = jax.random.normal(xkey, (batch, seq_len, input_size), jnp.float32)

    params = init_params(key, input_size, hidden_size, num_layers)

    pred = predictor_forward(x, params)
    pred = jax.block_until_ready(pred)

    ref = reference_forward(x, params)
    assert pred.shape == (batch, 1), pred.shape
    assert jnp.allclose(pred, ref, atol=1e-4, rtol=1e-4), (pred, ref)

    print("KERNEL_OK")
</pallas_src>

<mosaic_0001>
module attributes {stable_mosaic.version = 11 : i64} {
  func.func @_fused_predictor_kernel(%arg0: memref<64x16xf32, #tpu.memory_space<vmem>>, %arg1: memref<4x16x32xf32, #tpu.memory_space<vmem>>, %arg2: memref<4x32x32xf32, #tpu.memory_space<vmem>>, %arg3: memref<4x1x32xf32, #tpu.memory_space<vmem>>, %arg4: memref<4x32x32xf32, #tpu.memory_space<vmem>>, %arg5: memref<4x32x32xf32, #tpu.memory_space<vmem>>, %arg6: memref<4x1x32xf32, #tpu.memory_space<vmem>>, %arg7: memref<32x1xf32, #tpu.memory_space<vmem>>, %arg8: memref<1x1xf32, #tpu.memory_space<vmem>>, %arg9: memref<8x1xf32, #tpu.memory_space<vmem>>, %arg10: memref<4x64x32xf32, #tpu.memory_space<vmem>>, %arg11: memref<64x32xf32, #tpu.memory_space<vmem>>, %arg12: memref<8x32xf32, #tpu.memory_space<vmem>>, %arg13: memref<8x32xf32, #tpu.memory_space<vmem>>) attributes {dimension_semantics = [], scalar_prefetch = 0 : i64, scratch_operands = 4 : i64, tpu.core_type = #tpu.core_type<tc>} {
    %c0 = arith.constant 0 : index
    %c0_0 = arith.constant 0 : index
    %0 = vector.load %arg0[%c0, %c0_0] : memref<64x16xf32, #tpu.memory_space<vmem>>, vector<64x16xf32>
    %c0_1 = arith.constant 0 : index
    %c0_2 = arith.constant 0 : index
    %c0_3 = arith.constant 0 : index
    %1 = vector.load %arg1[%c0_1, %c0_2, %c0_3] : memref<4x16x32xf32, #tpu.memory_space<vmem>>, vector<1x16x32xf32>
    %2 = vector.shape_cast %1 : vector<1x16x32xf32> to vector<16x32xf32>
    %cst = arith.constant dense<0.000000e+00> : vector<64x32xf32>
    %3 = tpu.matmul %0, %2, %cst {dimension_numbers = #tpu.dot_dimension_numbers<[1], [0], [0], [1], [0, 0, 1, 1], [], []>} : vector<64x16xf32>, vector<16x32xf32>, vector<64x32xf32> -> vector<64x32xf32>
    %c0_4 = arith.constant 0 : index
    %c0_5 = arith.constant 0 : index
    %c0_6 = arith.constant 0 : index
    %4 = vector.load %arg3[%c0_4, %c0_5, %c0_6] : memref<4x1x32xf32, #tpu.memory_space<vmem>>, vector<1x1x32xf32>
    %5 = vector.shape_cast %4 : vector<1x1x32xf32> to vector<1x32xf32>
    %6 = vector.broadcast %5 : vector<1x32xf32> to vector<64x32xf32>
    %7 = arith.addf %3, %6 : vector<64x32xf32>
    %c0_7 = arith.constant 0 : index
    %c0_8 = arith.constant 0 : index
    %c0_9 = arith.constant 0 : index
    %8 = vector.load %arg10[%c0_7, %c0_8, %c0_9] : memref<4x64x32xf32, #tpu.memory_space<vmem>>, vector<1x64x32xf32>
    %9 = vector.shape_cast %8 : vector<1x64x32xf32> to vector<64x32xf32>
    %10 = vector.shape_cast %7 : vector<64x32xf32> to vector<1x64x32xf32>
    tpu.vector_store %arg10[%c0_7, %c0_8, %c0_9], %10 {strides = array<i32>} : memref<4x64x32xf32, #tpu.memory_space<vmem>>, vector<1x64x32xf32>,
    %c1 = arith.constant 1 : index
    %c0_10 = arith.constant 0 : index
    %c0_11 = arith.constant 0 : index
    %11 = vector.load %arg1[%c1, %c0_10, %c0_11] : memref<4x16x32xf32, #tpu.memory_space<vmem>>, vector<1x16x32xf32>
    %12 = vector.shape_cast %11 : vector<1x16x32xf32> to vector<16x32xf32>
    %cst_12 = arith.constant dense<0.000000e+00> : vector<64x32xf32>
    %13 = tpu.matmul %0, %12, %cst_12 {dimension_numbers = #tpu.dot_dimension_numbers<[1], [0], [0], [1], [0, 0, 1, 1], [], []>} : vector<64x16xf32>, vector<16x32xf32>, vector<64x32xf32> -> vector<64x32xf32>
    %c1_13 = arith.constant 1 : index
    %c0_14 = arith.constant 0 : index
    %c0_15 = arith.constant 0 : index
    %14 = vector.load %arg3[%c1_13, %c0_14, %c0_15] : memref<4x1x32xf32, #tpu.memory_space<vmem>>, vector<1x1x32xf32>
    %15 = vector.shape_cast %14 : vector<1x1x32xf32> to vector<1x32xf32>
    %16 = vector.broadcast %15 : vector<1x32xf32> to vector<64x32xf32>
    %17 = arith.addf %13, %16 : vector<64x32xf32>
    %c1_16 = arith.constant 1 : index
    %c0_17 = arith.constant 0 : index
    %c0_18 = arith.constant 0 : index
    %18 = vector.load %arg10[%c1_16, %c0_17, %c0_18] : memref<4x64x32xf32, #tpu.memory_space<vmem>>, vector<1x64x32xf32>
    %19 = vector.shape_cast %18 : vector<1x64x32xf32> to vector<64x32xf32>
    %20 = vector.shape_cast %17 : vector<64x32xf32> to vector<1x64x32xf32>
    tpu.vector_store %arg10[%c1_16, %c0_17, %c0_18], %20 {strides = array<i32>} : memref<4x64x32xf32, #tpu.memory_space<vmem>>, vector<1x64x32xf32>,
    %c2 = arith.constant 2 : index
    %c0_19 = arith.constant 0 : index
    %c0_20 = arith.constant 0 : index
    %21 = vector.load %arg1[%c2, %c0_19, %c0_20] : memref<4x16x32xf32, #tpu.memory_space<vmem>>, vector<1x16x32xf32>
    %22 = vector.shape_cast %21 : vector<1x16x32xf32> to vector<16x32xf32>
    %cst_21 = arith.constant dense<0.000000e+00> : vector<64x32xf32>
    %23 = tpu.matmul %0, %22, %cst_21 {dimension_numbers = #tpu.dot_dimension_numbers<[1], [0], [0], [1], [0, 0, 1, 1], [], []>} : vector<64x16xf32>, vector<16x32xf32>, vector<64x32xf32> -> vector<64x32xf32>
    %c2_22 = arith.constant 2 : index
    %c0_23 = arith.constant 0 : index
    %c0_24 = arith.constant 0 : index
    %24 = vector.load %arg3[%c2_22, %c0_23, %c0_24] : memref<4x1x32xf32, #tpu.memory_space<vmem>>, vector<1x1x32xf32>
    %25 = vector.shape_cast %24 : vector<1x1x32xf32> to vector<1x32xf32>
    %26 = vector.broadcast %25 : vector<1x32xf32> to vector<64x32xf32>
    %27 = arith.addf %23, %26 : vector<64x32xf32>
    %c2_25 = arith.constant 2 : index
    %c0_26 = arith.constant 0 : index
    %c0_27 = arith.constant 0 : index
    %28 = vector.load %arg10[%c2_25, %c0_26, %c0_27] : memref<4x64x32xf32, #tpu.memory_space<vmem>>, vector<1x64x32xf32>
    %29 = vector.shape_cast %28 : vector<1x64x32xf32> to vector<64x32xf32>
    %30 = vector.shape_cast %27 : vector<64x32xf32> to vector<1x64x32xf32>
    tpu.vector_store %arg10[%c2_25, %c0_26, %c0_27], %30 {strides = array<i32>} : memref<4x64x32xf32, #tpu.memory_space<vmem>>, vector<1x64x32xf32>,
    %c3 = arith.constant 3 : index
    %c0_28 = arith.constant 0 : index
    %c0_29 = arith.constant 0 : index
    %31 = vector.load %arg1[%c3, %c0_28, %c0_29] : memref<4x16x32xf32, #tpu.memory_space<vmem>>, vector<1x16x32xf32>
    %32 = vector.shape_cast %31 : vector<1x16x32xf32> to vector<16x32xf32>
    %cst_30 = arith.constant dense<0.000000e+00> : vector<64x32xf32>
    %33 = tpu.matmul %0, %32, %cst_30 {dimension_numbers = #tpu.dot_dimension_numbers<[1], [0], [0], [1], [0, 0, 1, 1], [], []>} : vector<64x16xf32>, vector<16x32xf32>, vector<64x32xf32> -> vector<64x32xf32>
    %c3_31 = arith.constant 3 : index
    %c0_32 = arith.constant 0 : index
    %c0_33 = arith.constant 0 : index
    %34 = vector.load %arg3[%c3_31, %c0_32, %c0_33] : memref<4x1x32xf32, #tpu.memory_space<vmem>>, vector<1x1x32xf32>
    %35 = vector.shape_cast %34 : vector<1x1x32xf32> to vector<1x32xf32>
    %36 = vector.broadcast %35 : vector<1x32xf32> to vector<64x32xf32>
    %37 = arith.addf %33, %36 : vector<64x32xf32>
    %c3_34 = arith.constant 3 : index
    %c0_35 = arith.constant 0 : index
    %c0_36 = arith.constant 0 : index
    %38 = vector.load %arg10[%c3_34, %c0_35, %c0_36] : memref<4x64x32xf32, #tpu.memory_space<vmem>>, vector<1x64x32xf32>
    %39 = vector.shape_cast %38 : vector<1x64x32xf32> to vector<64x32xf32>
    %40 = vector.shape_cast %37 : vector<64x32xf32> to vector<1x64x32xf32>
    tpu.vector_store %arg10[%c3_34, %c0_35, %c0_36], %40 {strides = array<i32>} : memref<4x64x32xf32, #tpu.memory_space<vmem>>, vector<1x64x32xf32>,
    %c0_37 = arith.constant 0 : index
    %c0_38 = arith.constant 0 : index
    %c0_39 = arith.constant 0 : index
    %41 = vector.load %arg2[%c0_37, %c0_38, %c0_39] : memref<4x32x32xf32, #tpu.memory_space<vmem>>, vector<1x32x32xf32>
    %42 = vector.shape_cast %41 : vector<1x32x32xf32> to vector<32x32xf32>
    %c1_40 = arith.constant 1 : index
    %c0_41 = arith.constant 0 : index
    %c0_42 = arith.constant 0 : index
    %43 = vector.load %arg2[%c1_40, %c0_41, %c0_42] : memref<4x32x32xf32, #tpu.memory_space<vmem>>, vector<1x32x32xf32>
    %44 = vector.shape_cast %43 : vector<1x32x32xf32> to vector<32x32xf32>
    %c2_43 = arith.constant 2 : index
    %c0_44 = arith.constant 0 : index
    %c0_45 = arith.constant 0 : index
    %45 = vector.load %arg2[%c2_43, %c0_44, %c0_45] : memref<4x32x32xf32, #tpu.memory_space<vmem>>, vector<1x32x32xf32>
    %46 = vector.shape_cast %45 : vector<1x32x32xf32> to vector<32x32xf32>
    %c3_46 = arith.constant 3 : index
    %c0_47 = arith.constant 0 : index
    %c0_48 = arith.constant 0 : index
    %47 = vector.load %arg2[%c3_46, %c0_47, %c0_48] : memref<4x32x32xf32, #tpu.memory_space<vmem>>, vector<1x32x32xf32>
    %48 = vector.shape_cast %47 : vector<1x32x32xf32> to vector<32x32xf32>
    %cst_49 = arith.constant 0.000000e+00 : f32
    %49 = vector.broadcast %cst_49 : f32 to vector<8x32xf32>
    %c0_50 = arith.constant 0 : index
    %c0_51 = arith.constant 0 : index
    %50 = vector.load %arg12[%c0_50, %c0_51] : memref<8x32xf32, #tpu.memory_space<vmem>>, vector<8x32xf32>
    tpu.vector_store %arg12[%c0_50, %c0_51], %49 {strides = array<i32>} : memref<8x32xf32, #tpu.memory_space<vmem>>, vector<8x32xf32>,
    %cst_52 = arith.constant 0.000000e+00 : f32
    %51 = vector.broadcast %cst_52 : f32 to vector<8x32xf32>
    %c0_53 = arith.constant 0 : index
    %c0_54 = arith.constant 0 : index
    %52 = vector.load %arg13[%c0_53, %c0_54] : memref<8x32xf32, #tpu.memory_space<vmem>>, vector<8x32xf32>
    tpu.vector_store %arg13[%c0_53, %c0_54], %51 {strides = array<i32>} : memref<8x32xf32, #tpu.memory_space<vmem>>, vector<8x32xf32>,
    %c0_i32 = arith.constant 0 : i32
    %c8_i32 = arith.constant 8 : i32
    %53 = arith.addi %c0_i32, %c8_i32 : i32
    %c1_i32 = arith.constant 1 : i32
    scf.for %arg14 = %c0_i32 to %53 step %c1_i32  : i32 {
      %c8_i32_129 = arith.constant 8 : i32
      %115 = arith.muli %arg14, %c8_i32_129 : i32
      %116 = tpu.assume_multiple %115, 8 : i32
      %c0_130 = arith.constant 0 : index
      %c0_131 = arith.constant 0 : index
      %117 = vector.load %arg12[%c0_130, %c0_131] : memref<8x32xf32, #tpu.memory_space<vmem>>, vector<8x32xf32>
      %c0_132 = arith.constant 0 : index
      %c0_133 = arith.constant 0 : index
      %118 = vector.load %arg13[%c0_132, %c0_133] : memref<8x32xf32, #tpu.memory_space<vmem>>, vector<8x32xf32>
      %c0_134 = arith.constant 0 : index
      %119 = arith.index_cast %116 : i32 to index
      %c0_135 = arith.constant 0 : index
      %120 = vector.load %arg10[%c0_134, %119, %c0_135] : memref<4x64x32xf32, #tpu.memory_space<vmem>>, vector<1x8x32xf32>
      %121 = vector.shape_cast %120 : vector<1x8x32xf32> to vector<8x32xf32>
      %cst_136 = arith.constant dense<0.000000e+00> : vector<8x32xf32>
      %122 = tpu.matmul %117, %42, %cst_136 {dimension_numbers = #tpu.dot_dimension_numbers<[1], [0], [0], [1], [0, 0, 1, 1], [], []>} : vector<8x32xf32>, vector<32x32xf32>, vector<8x32xf32> -> vector<8x32xf32>
      %123 = arith.addf %121, %122 : vector<8x32xf32>
      %c1_137 = arith.constant 1 : index
      %124 = arith.index_cast %116 : i32 to index
      %c0_138 = arith.constant 0 : index
      %125 = vector.load %arg10[%c1_137, %124, %c0_138] : memref<4x64x32xf32, #tpu.memory_space<vmem>>, vector<1x8x32xf32>
      %126 = vector.shape_cast %125 : vector<1x8x32xf32> to vector<8x32xf32>
      %cst_139 = arith.constant dense<0.000000e+00> : vector<8x32xf32>
      %127 = tpu.matmul %117, %44, %cst_139 {dimension_numbers = #tpu.dot_dimension_numbers<[1], [0], [0], [1], [0, 0, 1, 1], [], []>} : vector<8x32xf32>, vector<32x32xf32>, vector<8x32xf32> -> vector<8x32xf32>
      %128 = arith.addf %126, %127 : vector<8x32xf32>
      %c2_140 = arith.constant 2 : index
      %129 = arith.index_cast %116 : i32 to index
      %c0_141 = arith.constant 0 : index
      %130 = vector.load %arg10[%c2_140, %129, %c0_141] : memref<4x64x32xf32, #tpu.memory_space<vmem>>, vector<1x8x32xf32>
      %131 = vector.shape_cast %130 : vector<1x8x32xf32> to vector<8x32xf32>
      %cst_142 = arith.constant dense<0.000000e+00> : vector<8x32xf32>
      %132 = tpu.matmul %117, %46, %cst_142 {dimension_numbers = #tpu.dot_dimension_numbers<[1], [0], [0], [1], [0, 0, 1, 1], [], []>} : vector<8x32xf32>, vector<32x32xf32>, vector<8x32xf32> -> vector<8x32xf32>
      %133 = arith.addf %131, %132 : vector<8x32xf32>
      %c3_143 = arith.constant 3 : index
      %134 = arith.index_cast %116 : i32 to index
      %c0_144 = arith.constant 0 : index
      %135 = vector.load %arg10[%c3_143, %134, %c0_144] : memref<4x64x32xf32, #tpu.memory_space<vmem>>, vector<1x8x32xf32>
      %136 = vector.shape_cast %135 : vector<1x8x32xf32> to vector<8x32xf32>
      %cst_145 = arith.constant dense<0.000000e+00> : vector<8x32xf32>
      %137 = tpu.matmul %117, %48, %cst_145 {dimension_numbers = #tpu.dot_dimension_numbers<[1], [0], [0], [1], [0, 0, 1, 1], [], []>} : vector<8x32xf32>, vector<32x32xf32>, vector<8x32xf32> -> vector<8x32xf32>
      %138 = arith.addf %136, %137 : vector<8x32xf32>
      %139 = arith.negf %123 : vector<8x32xf32>
      %140 = math.exp %139 : vector<8x32xf32>
      %cst_146 = arith.constant 1.000000e+00 : f32
      %141 = vector.broadcast %cst_146 : f32 to vector<8x32xf32>
      %142 = arith.addf %141, %140 : vector<8x32xf32>
      %143 = arith.divf %141, %142 : vector<8x32xf32>
      %144 = arith.negf %128 : vector<8x32xf32>
      %145 = math.exp %144 : vector<8x32xf32>
      %cst_147 = arith.constant 1.000000e+00 : f32
      %146 = vector.broadcast %cst_147 : f32 to vector<8x32xf32>
      %147 = arith.addf %146, %145 : vector<8x32xf32>
      %148 = arith.divf %146, %147 : vector<8x32xf32>
      %149 = math.tanh %133 : vector<8x32xf32>
      %150 = arith.negf %138 : vector<8x32xf32>
      %151 = math.exp %150 : vector<8x32xf32>
      %cst_148 = arith.constant 1.000000e+00 : f32
      %152 = vector.broadcast %cst_148 : f32 to vector<8x32xf32>
      %153 = arith.addf %152, %151 : vector<8x32xf32>
      %154 = arith.divf %152, %153 : vector<8x32xf32>
      %155 = arith.mulf %148, %118 : vector<8x32xf32>
      %156 = arith.mulf %143, %149 : vector<8x32xf32>
      %157 = arith.addf %155, %156 : vector<8x32xf32>
      %158 = math.tanh %157 : vector<8x32xf32>
      %159 = arith.mulf %154, %158 : vector<8x32xf32>
      %c0_149 = arith.constant 0 : index
      %c0_150 = arith.constant 0 : index
      %160 = vector.load %arg13[%c0_149, %c0_150] : memref<8x32xf32, #tpu.memory_space<vmem>>, vector<8x32xf32>
      tpu.vector_store %arg13[%c0_149, %c0_150], %157 {strides = array<i32>} : memref<8x32xf32, #tpu.memory_space<vmem>>, vector<8x32xf32>,
      %c0_151 = arith.constant 0 : index
      %c0_152 = arith.constant 0 : index
      %161 = vector.load %arg12[%c0_151, %c0_152] : memref<8x32xf32, #tpu.memory_space<vmem>>, vector<8x32xf32>
      tpu.vector_store %arg12[%c0_151, %c0_152], %159 {strides = array<i32>} : memref<8x32xf32, #tpu.memory_space<vmem>>, vector<8x32xf32>,
      %162 = arith.index_cast %116 : i32 to index
      %c0_153 = arith.constant 0 : index
      %163 = vector.load %arg11[%162, %c0_153] : memref<64x32xf32, #tpu.memory_space<vmem>>, vector<8x32xf32>
      tpu.vector_store %arg11[%162, %c0_153], %159 {strides = array<i32>} : memref<64x32xf32, #tpu.memory_space<vmem>>, vector<8x32xf32>,
    }
    %c8_i32_55 = arith.constant 8 : i32
    %c0_56 = arith.constant 0 : index
    %c0_57 = arith.constant 0 : index
    %54 = vector.load %arg11[%c0_56, %c0_57] : memref<64x32xf32, #tpu.memory_space<vmem>>, vector<64x32xf32>
    %c0_58 = arith.constant 0 : index
    %c0_59 = arith.constant 0 : index
    %c0_60 = arith.constant 0 : index
    %55 = vector.load %arg4[%c0_58, %c0_59, %c0_60] : memref<4x32x32xf32, #tpu.memory_space<vmem>>, vector<1x32x32xf32>
    %56 = vector.shape_cast %55 : vector<1x32x32xf32> to vector<32x32xf32>
    %cst_61 = arith.constant dense<0.000000e+00> : vector<64x32xf32>
    %57 = tpu.matmul %54, %56, %cst_61 {dimension_numbers = #tpu.dot_dimension_numbers<[1], [0], [0], [1], [0, 0, 1, 1], [], []>} : vector<64x32xf32>, vector<32x32xf32>, vector<64x32xf32> -> vector<64x32xf32>
    %c0_62 = arith.constant 0 : index
    %c0_63 = arith.constant 0 : index
    %c0_64 = arith.constant 0 : index
    %58 = vector.load %arg6[%c0_62, %c0_63, %c0_64] : memref<4x1x32xf32, #tpu.memory_space<vmem>>, vector<1x1x32xf32>
    %59 = vector.shape_cast %58 : vector<1x1x32xf32> to vector<1x32xf32>
    %60 = vector.broadcast %59 : vector<1x32xf32> to vector<64x32xf32>
    %61 = arith.addf %57, %60 : vector<64x32xf32>
    %c0_65 = arith.constant 0 : index
    %c0_66 = arith.constant 0 : index
    %c0_67 = arith.constant 0 : index
    %62 = vector.load %arg10[%c0_65, %c0_66, %c0_67] : memref<4x64x32xf32, #tpu.memory_space<vmem>>, vector<1x64x32xf32>
    %63 = vector.shape_cast %62 : vector<1x64x32xf32> to vector<64x32xf32>
    %64 = vector.shape_cast %61 : vector<64x32xf32> to vector<1x64x32xf32>
    tpu.vector_store %arg10[%c0_65, %c0_66, %c0_67], %64 {strides = array<i32>} : memref<4x64x32xf32, #tpu.memory_space<vmem>>, vector<1x64x32xf32>,
    %c1_68 = arith.constant 1 : index
    %c0_69 = arith.constant 0 : index
    %c0_70 = arith.constant 0 : index
    %65 = vector.load %arg4[%c1_68, %c0_69, %c0_70] : memref<4x32x32xf32, #tpu.memory_space<vmem>>, vector<1x32x32xf32>
    %66 = vector.shape_cast %65 : vector<1x32x32xf32> to vector<32x32xf32>
    %cst_71 = arith.constant dense<0.000000e+00> : vector<64x32xf32>
    %67 = tpu.matmul %54, %66, %cst_71 {dimension_numbers = #tpu.dot_dimension_numbers<[1], [0], [0], [1], [0, 0, 1, 1], [], []>} : vector<64x32xf32>, vector<32x32xf32>, vector<64x32xf32> -> vector<64x32xf32>
    %c1_72 = arith.constant 1 : index
    %c0_73 = arith.constant 0 : index
    %c0_74 = arith.constant 0 : index
    %68 = vector.load %arg6[%c1_72, %c0_73, %c0_74] : memref<4x1x32xf32, #tpu.memory_space<vmem>>, vector<1x1x32xf32>
    %69 = vector.shape_cast %68 : vector<1x1x32xf32> to vector<1x32xf32>
    %70 = vector.broadcast %69 : vector<1x32xf32> to vector<64x32xf32>
    %71 = arith.addf %67, %70 : vector<64x32xf32>
    %c1_75 = arith.constant 1 : index
    %c0_76 = arith.constant 0 : index
    %c0_77 = arith.constant 0 : index
    %72 = vector.load %arg10[%c1_75, %c0_76, %c0_77] : memref<4x64x32xf32, #tpu.memory_space<vmem>>, vector<1x64x32xf32>
    %73 = vector.shape_cast %72 : vector<1x64x32xf32> to vector<64x32xf32>
    %74 = vector.shape_cast %71 : vector<64x32xf32> to vector<1x64x32xf32>
    tpu.vector_store %arg10[%c1_75, %c0_76, %c0_77], %74 {strides = array<i32>} : memref<4x64x32xf32, #tpu.memory_space<vmem>>, vector<1x64x32xf32>,
    %c2_78 = arith.constant 2 : index
    %c0_79 = arith.constant 0 : index
    %c0_80 = arith.constant 0 : index
    %75 = vector.load %arg4[%c2_78, %c0_79, %c0_80] : memref<4x32x32xf32, #tpu.memory_space<vmem>>, vector<1x32x32xf32>
    %76 = vector.shape_cast %75 : vector<1x32x32xf32> to vector<32x32xf32>
    %cst_81 = arith.constant dense<0.000000e+00> : vector<64x32xf32>
    %77 = tpu.matmul %54, %76, %cst_81 {dimension_numbers = #tpu.dot_dimension_numbers<[1], [0], [0], [1], [0, 0, 1, 1], [], []>} : vector<64x32xf32>, vector<32x32xf32>, vector<64x32xf32> -> vector<64x32xf32>
    %c2_82 = arith.constant 2 : index
    %c0_83 = arith.constant 0 : index
    %c0_84 = arith.constant 0 : index
    %78 = vector.load %arg6[%c2_82, %c0_83, %c0_84] : memref<4x1x32xf32, #tpu.memory_space<vmem>>, vector<1x1x32xf32>
    %79 = vector.shape_cast %78 : vector<1x1x32xf32> to vector<1x32xf32>
    %80 = vector.broadcast %79 : vector<1x32xf32> to vector<64x32xf32>
    %81 = arith.addf %77, %80 : vector<64x32xf32>
    %c2_85 = arith.constant 2 : index
    %c0_86 = arith.constant 0 : index
    %c0_87 = arith.constant 0 : index
    %82 = vector.load %arg10[%c2_85, %c0_86, %c0_87] : memref<4x64x32xf32, #tpu.memory_space<vmem>>, vector<1x64x32xf32>
    %83 = vector.shape_cast %82 : vector<1x64x32xf32> to vector<64x32xf32>
    %84 = vector.shape_cast %81 : vector<64x32xf32> to vector<1x64x32xf32>
    tpu.vector_store %arg10[%c2_85, %c0_86, %c0_87], %84 {strides = array<i32>} : memref<4x64x32xf32, #tpu.memory_space<vmem>>, vector<1x64x32xf32>,
    %c3_88 = arith.constant 3 : index
    %c0_89 = arith.constant 0 : index
    %c0_90 = arith.constant 0 : index
    %85 = vector.load %arg4[%c3_88, %c0_89, %c0_90] : memref<4x32x32xf32, #tpu.memory_space<vmem>>, vector<1x32x32xf32>
    %86 = vector.shape_cast %85 : vector<1x32x32xf32> to vector<32x32xf32>
    %cst_91 = arith.constant dense<0.000000e+00> : vector<64x32xf32>
    %87 = tpu.matmul %54, %86, %cst_91 {dimension_numbers = #tpu.dot_dimension_numbers<[1], [0], [0], [1], [0, 0, 1, 1], [], []>} : vector<64x32xf32>, vector<32x32xf32>, vector<64x32xf32> -> vector<64x32xf32>
    %c3_92 = arith.constant 3 : index
    %c0_93 = arith.constant 0 : index
    %c0_94 = arith.constant 0 : index
    %88 = vector.load %arg6[%c3_92, %c0_93, %c0_94] : memref<4x1x32xf32, #tpu.memory_space<vmem>>, vector<1x1x32xf32>
    %89 = vector.shape_cast %88 : vector<1x1x32xf32> to vector<1x32xf32>
    %90 = vector.broadcast %89 : vector<1x32xf32> to vector<64x32xf32>
    %91 = arith.addf %87, %90 : vector<64x32xf32>
    %c3_95 = arith.constant 3 : index
    %c0_96 = arith.constant 0 : index
    %c0_97 = arith.constant 0 : index
    %92 = vector.load %arg10[%c3_95, %c0_96, %c0_97] : memref<4x64x32xf32, #tpu.memory_space<vmem>>, vector<1x64x32xf32>
    %93 = vector.shape_cast %92 : vector<1x64x32xf32> to vector<64x32xf32>
    %94 = vector.shape_cast %91 : vector<64x32xf32> to vector<1x64x32xf32>
    tpu.vector_store %arg10[%c3_95, %c0_96, %c0_97], %94 {strides = array<i32>} : memref<4x64x32xf32, #tpu.memory_space<vmem>>, vector<1x64x32xf32>,
    %c0_98 = arith.constant 0 : index
    %c0_99 = arith.constant 0 : index
    %c0_100 = arith.constant 0 : index
    %95 = vector.load %arg5[%c0_98, %c0_99, %c0_100] : memref<4x32x32xf32, #tpu.memory_space<vmem>>, vector<1x32x32xf32>
    %96 = vector.shape_cast %95 : vector<1x32x32xf32> to vector<32x32xf32>
    %c1_101 = arith.constant 1 : index
    %c0_102 = arith.constant 0 : index
    %c0_103 = arith.constant 0 : index
    %97 = vector.load %arg5[%c1_101, %c0_102, %c0_103] : memref<4x32x32xf32, #tpu.memory_space<vmem>>, vector<1x32x32xf32>
    %98 = vector.shape_cast %97 : vector<1x32x32xf32> to vector<32x32xf32>
    %c2_104 = arith.constant 2 : index
    %c0_105 = arith.constant 0 : index
    %c0_106 = arith.constant 0 : index
    %99 = vector.load %arg5[%c2_104, %c0_105, %c0_106] : memref<4x32x32xf32, #tpu.memory_space<vmem>>, vector<1x32x32xf32>
    %100 = vector.shape_cast %99 : vector<1x32x32xf32> to vector<32x32xf32>
    %c3_107 = arith.constant 3 : index
    %c0_108 = arith.constant 0 : index
    %c0_109 = arith.constant 0 : index
    %101 = vector.load %arg5[%c3_107, %c0_108, %c0_109] : memref<4x32x32xf32, #tpu.memory_space<vmem>>, vector<1x32x32xf32>
    %102 = vector.shape_cast %101 : vector<1x32x32xf32> to vector<32x32xf32>
    %cst_110 = arith.constant 0.000000e+00 : f32
    %103 = vector.broadcast %cst_110 : f32 to vector<8x32xf32>
    %c0_111 = arith.constant 0 : index
    %c0_112 = arith.constant 0 : index
    %104 = vector.load %arg12[%c0_111, %c0_112] : memref<8x32xf32, #tpu.memory_space<vmem>>, vector<8x32xf32>
    tpu.vector_store %arg12[%c0_111, %c0_112], %103 {strides = array<i32>} : memref<8x32xf32, #tpu.memory_space<vmem>>, vector<8x32xf32>,
    %cst_113 = arith.constant 0.000000e+00 : f32
    %105 = vector.broadcast %cst_113 : f32 to vector<8x32xf32>
    %c0_114 = arith.constant 0 : index
    %c0_115 = arith.constant 0 : index
    %106 = vector.load %arg13[%c0_114, %c0_115] : memref<8x32xf32, #tpu.memory_space<vmem>>, vector<8x32xf32>
    tpu.vector_store %arg13[%c0_114, %c0_115], %105 {strides = array<i32>} : memref<8x32xf32, #tpu.memory_space<vmem>>, vector<8x32xf32>,
    %c0_i32_116 = arith.constant 0 : i32
    %c8_i32_117 = arith.constant 8 : i32
    %107 = arith.addi %c0_i32_116, %c8_i32_117 : i32
    %c1_i32_118 = arith.constant 1 : i32
    scf.for %arg14 = %c0_i32_116 to %107 step %c1_i32_118  : i32 {
      %c8_i32_129 = arith.constant 8 : i32
      %115 = arith.muli %arg14, %c8_i32_129 : i32
      %116 = tpu.assume_multiple %115, 8 : i32
      %c0_130 = arith.constant 0 : index
      %c0_131 = arith.constant 0 : index
      %117 = vector.load %arg12[%c0_130, %c0_131] : memref<8x32xf32, #tpu.memory_space<vmem>>, vector<8x32xf32>
      %c0_132 = arith.constant 0 : index
      %c0_133 = arith.constant 0 : index
      %118 = vector.load %arg13[%c0_132, %c0_133] : memref<8x32xf32, #tpu.memory_space<vmem>>, vector<8x32xf32>
      %c0_134 = arith.constant 0 : index
      %119 = arith.index_cast %116 : i32 to index
      %c0_135 = arith.constant 0 : index
      %120 = vector.load %arg10[%c0_134, %119, %c0_135] : memref<4x64x32xf32, #tpu.memory_space<vmem>>, vector<1x8x32xf32>
      %121 = vector.shape_cast %120 : vector<1x8x32xf32> to vector<8x32xf32>
      %cst_136 = arith.constant dense<0.000000e+00> : vector<8x32xf32>
      %122 = tpu.matmul %117, %96, %cst_136 {dimension_numbers = #tpu.dot_dimension_numbers<[1], [0], [0], [1], [0, 0, 1, 1], [], []>} : vector<8x32xf32>, vector<32x32xf32>, vector<8x32xf32> -> vector<8x32xf32>
      %123 = arith.addf %121, %122 : vector<8x32xf32>
      %c1_137 = arith.constant 1 : index
      %124 = arith.index_cast %116 : i32 to index
      %c0_138 = arith.constant 0 : index
      %125 = vector.load %arg10[%c1_137, %124, %c0_138] : memref<4x64x32xf32, #tpu.memory_space<vmem>>, vector<1x8x32xf32>
      %126 = vector.shape_cast %125 : vector<1x8x32xf32> to vector<8x32xf32>
      %cst_139 = arith.constant dense<0.000000e+00> : vector<8x32xf32>
      %127 = tpu.matmul %117, %98, %cst_139 {dimension_numbers = #tpu.dot_dimension_numbers<[1], [0], [0], [1], [0, 0, 1, 1], [], []>} : vector<8x32xf32>, vector<32x32xf32>, vector<8x32xf32> -> vector<8x32xf32>
      %128 = arith.addf %126, %127 : vector<8x32xf32>
      %c2_140 = arith.constant 2 : index
      %129 = arith.index_cast %116 : i32 to index
      %c0_141 = arith.constant 0 : index
      %130 = vector.load %arg10[%c2_140, %129, %c0_141] : memref<4x64x32xf32, #tpu.memory_space<vmem>>, vector<1x8x32xf32>
      %131 = vector.shape_cast %130 : vector<1x8x32xf32> to vector<8x32xf32>
      %cst_142 = arith.constant dense<0.000000e+00> : vector<8x32xf32>
      %132 = tpu.matmul %117, %100, %cst_142 {dimension_numbers = #tpu.dot_dimension_numbers<[1], [0], [0], [1], [0, 0, 1, 1], [], []>} : vector<8x32xf32>, vector<32x32xf32>, vector<8x32xf32> -> vector<8x32xf32>
      %133 = arith.addf %131, %132 : vector<8x32xf32>
      %c3_143 = arith.constant 3 : index
      %134 = arith.index_cast %116 : i32 to index
      %c0_144 = arith.constant 0 : index
      %135 = vector.load %arg10[%c3_143, %134, %c0_144] : memref<4x64x32xf32, #tpu.memory_space<vmem>>, vector<1x8x32xf32>
      %136 = vector.shape_cast %135 : vector<1x8x32xf32> to vector<8x32xf32>
      %cst_145 = arith.constant dense<0.000000e+00> : vector<8x32xf32>
      %137 = tpu.matmul %117, %102, %cst_145 {dimension_numbers = #tpu.dot_dimension_numbers<[1], [0], [0], [1], [0, 0, 1, 1], [], []>} : vector<8x32xf32>, vector<32x32xf32>, vector<8x32xf32> -> vector<8x32xf32>
      %138 = arith.addf %136, %137 : vector<8x32xf32>
      %139 = arith.negf %123 : vector<8x32xf32>
      %140 = math.exp %139 : vector<8x32xf32>
      %cst_146 = arith.constant 1.000000e+00 : f32
      %141 = vector.broadcast %cst_146 : f32 to vector<8x32xf32>
      %142 = arith.addf %141, %140 : vector<8x32xf32>
      %143 = arith.divf %141, %142 : vector<8x32xf32>
      %144 = arith.negf %128 : vector<8x32xf32>
      %145 = math.exp %144 : vector<8x32xf32>
      %cst_147 = arith.constant 1.000000e+00 : f32
      %146 = vector.broadcast %cst_147 : f32 to vector<8x32xf32>
      %147 = arith.addf %146, %145 : vector<8x32xf32>
      %148 = arith.divf %146, %147 : vector<8x32xf32>
      %149 = math.tanh %133 : vector<8x32xf32>
      %150 = arith.negf %138 : vector<8x32xf32>
      %151 = math.exp %150 : vector<8x32xf32>
      %cst_148 = arith.constant 1.000000e+00 : f32
      %152 = vector.broadcast %cst_148 : f32 to vector<8x32xf32>
      %153 = arith.addf %152, %151 : vector<8x32xf32>
      %154 = arith.divf %152, %153 : vector<8x32xf32>
      %155 = arith.mulf %148, %118 : vector<8x32xf32>
      %156 = arith.mulf %143, %149 : vector<8x32xf32>
      %157 = arith.addf %155, %156 : vector<8x32xf32>
      %158 = math.tanh %157 : vector<8x32xf32>
      %159 = arith.mulf %154, %158 : vector<8x32xf32>
      %c0_149 = arith.constant 0 : index
      %c0_150 = arith.constant 0 : index
      %160 = vector.load %arg13[%c0_149, %c0_150] : memref<8x32xf32, #tpu.memory_space<vmem>>, vector<8x32xf32>
      tpu.vector_store %arg13[%c0_149, %c0_150], %157 {strides = array<i32>} : memref<8x32xf32, #tpu.memory_space<vmem>>, vector<8x32xf32>,
      %c0_151 = arith.constant 0 : index
      %c0_152 = arith.constant 0 : index
      %161 = vector.load %arg12[%c0_151, %c0_152] : memref<8x32xf32, #tpu.memory_space<vmem>>, vector<8x32xf32>
      tpu.vector_store %arg12[%c0_151, %c0_152], %159 {strides = array<i32>} : memref<8x32xf32, #tpu.memory_space<vmem>>, vector<8x32xf32>,
    }
    %c8_i32_119 = arith.constant 8 : i32
    %c0_120 = arith.constant 0 : index
    %c0_121 = arith.constant 0 : index
    %108 = vector.load %arg12[%c0_120, %c0_121] : memref<8x32xf32, #tpu.memory_space<vmem>>, vector<8x32xf32>
    %c0_122 = arith.constant 0 : index
    %c0_123 = arith.constant 0 : index
    %109 = vector.load %arg7[%c0_122, %c0_123] : memref<32x1xf32, #tpu.memory_space<vmem>>, vector<32x1xf32>
    %cst_124 = arith.constant dense<0.000000e+00> : vector<8x1xf32>
    %110 = tpu.matmul %108, %109, %cst_124 {dimension_numbers = #tpu.dot_dimension_numbers<[1], [0], [0], [1], [0, 0, 1, 1], [], []>} : vector<8x32xf32>, vector<32x1xf32>, vector<8x1xf32> -> vector<8x1xf32>
    %c0_125 = arith.constant 0 : index
    %c0_126 = arith.constant 0 : index
    %111 = vector.load %arg8[%c0_125, %c0_126] : memref<1x1xf32, #tpu.memory_space<vmem>>, vector<1x1xf32>
    %112 = vector.broadcast %111 : vector<1x1xf32> to vector<8x1xf32>
    %113 = arith.addf %110, %112 : vector<8x1xf32>
    %c0_127 = arith.constant 0 : index
    %c0_128 = arith.constant 0 : index
    %114 = vector.load %arg9[%c0_127, %c0_128] : memref<8x1xf32, #tpu.memory_space<vmem>>, vector<8x1xf32>
    tpu.vector_store %arg9[%c0_127, %c0_128], %113 {strides = array<i32>} : memref<8x1xf32, #tpu.memory_space<vmem>>, vector<8x1xf32>,
    return
  }
}

</mosaic_0001>

<llo_original>
// kernel: predictor_forward.1
$region0: #{predictor_forward.1}
  #allocation0 [shape = 'u32[]', space=smem, size = 0x4, offset = 0x4, fixed_abs, tag = 'smem constant byte address 0x4 - core index']
  #allocation1 [shape = 'u32[144,128]{1,0:T(1,128)}', space=vmem, size = 0x12000, scoped, tag = 'internal scratch']
  #allocation2 [shape = 'f32[4,64,32]{2,1,0:T(8,128)}', space=vmem, size = 0x20000, scoped, tag = 'scratch operand']
  #allocation3 [shape = 'f32[64,32]{1,0:T(8,128)}', space=vmem, size = 0x8000, scoped, tag = 'scratch operand']
  #allocation4 [shape = 'f32[8,32]{1,0:T(8,128)}', space=vmem, size = 0x1000, scoped, tag = 'scratch operand']
  #allocation5 [shape = 'f32[8,32]{1,0:T(8,128)}', space=vmem, size = 0x1000, scoped, tag = 'scratch operand']
  #allocation6 [shape = 'f32[1,1]{1,0:T(1,128)S(1)}', space=vmem, size = 0x200, scoped, tag = 'scoped memory for predictor_forward.1']
  %s0 = inlined_call_operand.vmem [shape: f32[64,16], index: 0, kind: input, shape index: {}]
  %s1 = inlined_call_operand.hbm [shape: f32[4,16,32], index: 1, kind: input, shape index: {}]
  %s2 = inlined_call_operand.vmem [shape: f32[4,32,32], index: 2, kind: input, shape index: {}]
  %s3 = inlined_call_operand.vmem [shape: f32[4,1,32], index: 3, kind: input, shape index: {}]
  %s4 = inlined_call_operand.hbm [shape: f32[4,32,32], index: 4, kind: input, shape index: {}]
  %s5 = inlined_call_operand.hbm [shape: f32[4,32,32], index: 5, kind: input, shape index: {}]
  %s6 = inlined_call_operand.vmem [shape: f32[4,1,32], index: 6, kind: input, shape index: {}]
  %s7 = inlined_call_operand.vmem [shape: f32[32,1], index: 7, kind: input, shape index: {}]
  %s8 = inlined_call_operand.<no memory space> [shape: f32[1,1], index: 8, kind: input, shape index: {}]
  %s9 = inlined_call_operand.vmem [shape: f32[8,1], index: 9, kind: output, shape index: {}]
  %s10 = sld [smem:[#allocation0]]
  $region72: #{predictor_forward.1} parent=0
    _
  %s12 = ssub.s32 1, %s10
  %s13 = scalar_select 0, %s12, %s10
  %v14 = vstv %s8
  %15 = vst [vmem:[#allocation6] sm:$0x1] %v14
  $region1: #{predictor_forward.1} parent=0
    #allocation7 [shape = 'u8[32768]{0}', space=vmem, size = 0x8000, scoped, tag = 'input window, operand 1, single buffered']
    #allocation8 [shape = 's32[1]{0}', space=sflag, size = 0x4, scoped, tag = 'scoped memory for predictor_forward.1']
    #allocation9 [shape = 'u8[65536]{0}', space=vmem, size = 0x10000, scoped, tag = 'input window, operand 4, single buffered']
    #allocation10 [shape = 's32[1]{0}', space=sflag, size = 0x4, scoped, tag = 'scoped memory for predictor_forward.1']
    #allocation11 [shape = 'u8[65536]{0}', space=vmem, size = 0x10000, scoped, tag = 'input window, operand 5, single buffered']
    %16 = vsyncpa [#allocation8], 0
    %17 = vsyncpa [#allocation10], 0
    // Predicated region
    $region2: #{predictor_forward.1} parent=1 // pred_check
      _
    $region3: #{predictor_forward.1} parent=1 // pred_check_branch
      %19 = sbr.rel (0) target = $region5
    $region4: #{predictor_forward.1} parent=1 // pred_region
      _
    $region5: #{predictor_forward.1} parent=1 // pred_fallthru
      _
    // Predicated region
    $region6: #{predictor_forward.1} parent=1 // pred_check
      _
    $region7: #{predictor_forward.1} parent=1 // pred_check_branch
      %21 = sbr.rel (0) target = $region9
    $region8: #{predictor_forward.1} parent=1 // pred_region
      %s23 = ssub.s32 1024, 1024
      %24 = vsyncadd [#allocation8], %s23
      %s25 = sshll.u32 [#allocation7], 4
      %s26 = int_to_ptr.vmem [resolvable:$true] %s25
      %31 = dma.hbm_to_vmem [thread:$0]  %s1, 1024, %s26, [#allocation8], 128, 128, 8
    $region9: #{predictor_forward.1} parent=1 // pred_fallthru
      _
    // Predicated region
    $region10: #{predictor_forward.1} parent=1 // pred_check
      _
    $region11: #{predictor_forward.1} parent=1 // pred_check_branch
      %33 = sbr.rel (0) target = $region13
    $region12: #{predictor_forward.1} parent=1 // pred_region
      _
    $region13: #{predictor_forward.1} parent=1 // pred_fallthru
      _
    // Predicated region
    $region14: #{predictor_forward.1} parent=1 // pred_check
      _
    $region15: #{predictor_forward.1} parent=1 // pred_check_branch
      %35 = sbr.rel (0) target = $region17
    $region16: #{predictor_forward.1} parent=1 // pred_region
      _
    $region17: #{predictor_forward.1} parent=1 // pred_fallthru
      _
    // Predicated region
    $region18: #{predictor_forward.1} parent=1 // pred_check
      _
    $region19: #{predictor_forward.1} parent=1 // pred_check_branch
      %37 = sbr.rel (0) target = $region21
    $region20: #{predictor_forward.1} parent=1 // pred_region
      %s39 = ssub.s32 2048, 2048
      %40 = vsyncadd [#allocation10], %s39
      %s41 = sshll.u32 [#allocation9], 4
      %s42 = int_to_ptr.vmem [resolvable:$true] %s41
      %47 = dma.hbm_to_vmem [thread:$0]  %s4, 2048, %s42, [#allocation10], 128, 128, 8
    $region21: #{predictor_forward.1} parent=1 // pred_fallthru
      _
    // Predicated region
    $region22: #{predictor_forward.1} parent=1 // pred_check
      _
    $region23: #{predictor_forward.1} parent=1 // pred_check_branch
      %49 = sbr.rel (0) target = $region25
    $region24: #{predictor_forward.1} parent=1 // pred_region
      %s51 = ssub.s32 2048, 2048
      %52 = vsyncadd [#allocation10], %s51
      %s53 = sshll.u32 [#allocation11], 4
      %s54 = int_to_ptr.vmem [resolvable:$true] %s53
      %59 = dma.hbm_to_vmem [thread:$0]  %s5, 2048, %s54, [#allocation10], 128, 128, 8
    $region25: #{predictor_forward.1} parent=1 // pred_fallthru
      _
    // Predicated region
    $region26: #{predictor_forward.1} parent=1 // pred_check
      _
    $region27: #{predictor_forward.1} parent=1 // pred_check_branch
      %61 = sbr.rel (0) target = $region29
    $region28: #{predictor_forward.1} parent=1 // pred_region
      _
    $region29: #{predictor_forward.1} parent=1 // pred_fallthru
      _
    // Predicated region
    $region30: #{predictor_forward.1} parent=1 // pred_check
      _
    $region31: #{predictor_forward.1} parent=1 // pred_check_branch
      %63 = sbr.rel (0) target = $region33
    $region32: #{predictor_forward.1} parent=1 // pred_region
      _
    $region33: #{predictor_forward.1} parent=1 // pred_fallthru
      _
    // Predicated region
    $region34: #{predictor_forward.1} parent=1 // pred_check
      _
    $region35: #{predictor_forward.1} parent=1 // pred_check_branch
      %65 = sbr.rel (0) target = $region37
    $region36: #{predictor_forward.1} parent=1 // pred_region
      _
    $region37: #{predictor_forward.1} parent=1 // pred_fallthru
      _
    // Predicated region
    $region38: #{predictor_forward.1} parent=1 // pred_check
      _
    $region39: #{predictor_forward.1} parent=1 // pred_check_branch
      %67 = sbr.rel (0) target = $region41
    $region40: #{predictor_forward.1} parent=1 // pred_region
      %68 = dma.done [#allocation8], 1024
    $region41: #{predictor_forward.1} parent=1 // pred_fallthru
      _
    // Predicated region
    $region42: #{predictor_forward.1} parent=1 // pred_check
      _
    $region43: #{predictor_forward.1} parent=1 // pred_check_branch
      %70 = sbr.rel (0) target = $region45
    $region44: #{predictor_forward.1} parent=1 // pred_region
      %71 = dma.done [#allocation10], 2048
    $region45: #{predictor_forward.1} parent=1 // pred_fallthru
      _
    // Predicated region
    $region46: #{predictor_forward.1} parent=1 // pred_check
      _
    $region47: #{predictor_forward.1} parent=1 // pred_check_branch
      %73 = sbr.rel (0) target = $region49
    $region48: #{predictor_forward.1} parent=1 // pred_region
      %74 = dma.done [#allocation10], 2048
    $region49: #{predictor_forward.1} parent=1 // pred_fallthru
      _
    %v75 = vld [vmem:[%s0] sm:$0xff]
    %v76 = vld [vmem:[%s0 + $0x8] sm:$0xff]
    %v77 = vld [vmem:[%s0 + $0x10] sm:$0xff]
    %v78 = vld [vmem:[%s0 + $0x18] sm:$0xff]
    %v79 = vld [vmem:[%s0 + $0x20] sm:$0xff]
    %v80 = vld [vmem:[%s0 + $0x28] sm:$0xff]
    %v81 = vld [vmem:[%s0 + $0x30] sm:$0xff]
    %v82 = vld [vmem:[%s0 + $0x38] sm:$0xff]
    %v83 = vld [vmem:[#allocation7] sm:$0xff]
    %v84 = vld [vmem:[#allocation7 + $0x8] sm:$0xff]
    %v85 = vld [vmem:[%s3] sm:$0x1]
    %v87 = vlaneseq
    %v88 = vshrl.u32 %v87, 7
    %v89 = vsub.s32 0, %v88
    %v90 = vrot.slane %v85, %v89
    %vm92 = vcmask 130048
    %v94 = vsel %vm92, %v75, 0
    %v97 = vsel %vm92, %v76, 0
    %v100 = vsel %vm92, %v77, 0
    %v103 = vsel %vm92, %v78, 0
    %v106 = vsel %vm92, %v79, 0
    %v109 = vsel %vm92, %v80, 0
    %v112 = vsel %vm92, %v81, 0
    %v115 = vsel %vm92, %v82, 0
    %117 = vmatprep.subr.mxu0 0.0
    %118 = vmatpush1.msra.mxu0 %v83
    %119 = vmatprep.subr.mxu0 0.0
    %120 = vmatpush1.msra.mxu0 %v84
    %121 = vmatprep.subr.mxu0 0.0
    %122 = vmatpush1.msra.mxu0 0.0
    %123 = vmatprep.subr.mxu0 0.0
    %124 = vmatpush1.msra.mxu0 0.0
    %125 = vmatprep.subr.mxu0 0.0
    %126 = vmatpush1.msra.mxu0 0.0
    %127 = vmatprep.subr.mxu0 0.0
    %128 = vmatpush1.msra.mxu0 0.0
    %129 = vmatprep.subr.mxu0 0.0
    %130 = vmatpush1.msra.mxu0 0.0
    %131 = vmatprep.subr.mxu0 0.0
    %132 = vmatpush1.msra.mxu0 0.0
    %133 = vmatprep.subr.mxu0 0.0
    %134 = vmatpush1.msra.mxu0 0.0
    %135 = vmatprep.subr.mxu0 0.0
    %136 = vmatpush1.msra.mxu0 0.0
    %137 = vmatprep.subr.mxu0 0.0
    %138 = vmatpush1.msra.mxu0 0.0
    %139 = vmatprep.subr.mxu0 0.0
    %140 = vmatpush1.msra.mxu0 0.0
    %141 = vmatprep.subr.mxu0 0.0
    %142 = vmatpush1.msra.mxu0 0.0
    %143 = vmatprep.subr.mxu0 0.0
    %144 = vmatpush1.msra.mxu0 0.0
    %145 = vmatprep.subr.mxu0 0.0
    %146 = vmatpush1.msra.mxu0 0.0
    %147 = vmatprep.subr.mxu0 0.0
    %148 = vmatpush1.msra.mxu0 0.0
    %149 = vmatprep.subr.mxu0 0.0
    %150 = vmatpush1.msra.mxu0 0.0
    %151 = vmatprep.subr.mxu0 0.0
    %152 = vmatpush1.msra.mxu0 0.0
    %153 = vmatprep.subr.mxu0 0.0
    %154 = vmatpush1.msra.mxu0 0.0
    %155 = vmatprep.subr.mxu0 0.0
    %156 = vmatpush1.msra.mxu0 0.0
    %157 = vmatprep.subr.mxu0 0.0
    %158 = vmatpush1.msra.mxu0 0.0
    %159 = vmatprep.subr.mxu0 0.0
    %160 = vmatpush1.msra.mxu0 0.0
    %161 = vmatprep.subr.mxu0 0.0
    %162 = vmatpush1.msra.mxu0 0.0
    %163 = vmatprep.subr.mxu0 0.0
    %164 = vmatpush1.msra.mxu0 0.0
    %165 = vmatprep.subr.mxu0 0.0
    %166 = vmatpush1.msra.mxu0 0.0
    %167 = vmatprep.subr.mxu0 0.0
    %168 = vmatpush1.msra.mxu0 0.0
    %169 = vmatprep.subr.mxu0 0.0
    %170 = vmatpush1.msra.mxu0 0.0
    %171 = vmatprep.subr.mxu0 0.0
    %172 = vmatpush1.msra.mxu0 0.0
    %173 = vmatprep.subr.mxu0 0.0
    %174 = vmatpush1.msra.mxu0 0.0
    %175 = vmatprep.subr.mxu0 0.0
    %176 = vmatpush1.msra.mxu0 0.0
    %177 = vmatprep.subr.mxu0 0.0
    %178 = vmatpush1.msra.mxu0 0.0
    %179 = vmatprep.subr.mxu0 0.0
    %180 = vmatpush1.msra.mxu0 0.0
    %181 = vmatprep.mubr.f32.mxu0 0.0
    %182 = vmatmul.mubr.f32.gmra.mrb[0].mxu0 %v94
    %v183 = vpop.f32.mrb[0].mxu0
    %v184 = vadd.f32 %v90, %v183
    %v185 = vpop.f32.mrb[0].mxu0
    %186 = vmatprep.mubr.f32.mxu0 0.0
    %187 = vmatmul.mubr.f32.gmra.mrb[0].mxu0 %v97
    %v188 = vpop.f32.mrb[0].mxu0
    %v189 = vadd.f32 %v90, %v188
    %v190 = vpop.f32.mrb[0].mxu0
    %191 = vmatprep.mubr.f32.mxu0 0.0
    %192 = vmatmul.mubr.f32.gmra.mrb[0].mxu0 %v100
    %v193 = vpop.f32.mrb[0].mxu0
    %v194 = vadd.f32 %v90, %v193
    %v195 = vpop.f32.mrb[0].mxu0
    %196 = vmatprep.mubr.f32.mxu0 0.0
    %197 = vmatmul.mubr.f32.gmra.mrb[0].mxu0 %v103
    %v198 = vpop.f32.mrb[0].mxu0
    %v199 = vadd.f32 %v90, %v198
    %v200 = vpop.f32.mrb[0].mxu0
    %201 = vmatprep.mubr.f32.mxu0 0.0
    %202 = vmatmul.mubr.f32.gmra.mrb[0].mxu0 %v106
    %v203 = vpop.f32.mrb[0].mxu0
    %v204 = vadd.f32 %v90, %v203
    %v205 = vpop.f32.mrb[0].mxu0
    %206 = vmatprep.mubr.f32.mxu0 0.0
    %207 = vmatmul.mubr.f32.gmra.mrb[0].mxu0 %v109
    %v208 = vpop.f32.mrb[0].mxu0
    %v209 = vadd.f32 %v90, %v208
    %v210 = vpop.f32.mrb[0].mxu0
    %211 = vmatprep.mubr.f32.mxu0 0.0
    %212 = vmatmul.mubr.f32.gmra.mrb[0].mxu0 %v112
    %v213 = vpop.f32.mrb[0].mxu0
    %v214 = vadd.f32 %v90, %v213
    %v215 = vpop.f32.mrb[0].mxu0
    %216 = vmatprep.mubr.f32.mxu0 0.0
    %217 = vmatmul.mubr.f32.gmra.mrb[0].mxu0 %v115
    %v218 = vpop.f32.mrb[0].mxu0
    %v219 = vadd.f32 %v90, %v218
    %v220 = vpop.f32.mrb[0].mxu0
    %221 = vdwg.mxu0
    %vm222 = vcmask 261120
    %223 = vst.msk [vmem:[#allocation2] sm:$0xff] %vm222, %v184
    %224 = vst.msk [vmem:[#allocation2 + $0x8] sm:$0xff] %vm222, %v189
    %225 = vst.msk [vmem:[#allocation2 + $0x10] sm:$0xff] %vm222, %v194
    %226 = vst.msk [vmem:[#allocation2 + $0x18] sm:$0xff] %vm222, %v199
    %227 = vst.msk [vmem:[#allocation2 + $0x20] sm:$0xff] %vm222, %v204
    %228 = vst.msk [vmem:[#allocation2 + $0x28] sm:$0xff] %vm222, %v209
    %229 = vst.msk [vmem:[#allocation2 + $0x30] sm:$0xff] %vm222, %v214
    %230 = vst.msk [vmem:[#allocation2 + $0x38] sm:$0xff] %vm222, %v219
    %s231 = scalar_lea.vmem [#allocation7], 16
    %v232 = vld [vmem:[%s231] sm:$0xff]
    %v233 = vld [vmem:[%s231 + $0x8] sm:$0xff]
    %s234 = scalar_lea.vmem %s3, 1
    %v235 = vld [vmem:[%s234] sm:$0x1]
    %v237 = vlaneseq
    %v238 = vshrl.u32 %v237, 7
    %v239 = vsub.s32 0, %v238
    %v240 = vrot.slane %v235, %v239
    %242 = vmatprep.subr.mxu0 0.0
    %243 = vmatpush1.msra.mxu0 %v232
    %244 = vmatprep.subr.mxu0 0.0
    %245 = vmatpush1.msra.mxu0 %v233
    %246 = vmatprep.subr.mxu0 0.0
    %247 = vmatpush1.msra.mxu0 0.0
    %248 = vmatprep.subr.mxu0 0.0
    %249 = vmatpush1.msra.mxu0 0.0
    %250 = vmatprep.subr.mxu0 0.0
    %251 = vmatpush1.msra.mxu0 0.0
    %252 = vmatprep.subr.mxu0 0.0
    %253 = vmatpush1.msra.mxu0 0.0
    %254 = vmatprep.subr.mxu0 0.0
    %255 = vmatpush1.msra.mxu0 0.0
    %256 = vmatprep.subr.mxu0 0.0
    %257 = vmatpush1.msra.mxu0 0.0
    %258 = vmatprep.subr.mxu0 0.0
    %259 = vmatpush1.msra.mxu0 0.0
    %260 = vmatprep.subr.mxu0 0.0
    %261 = vmatpush1.msra.mxu0 0.0
    %262 = vmatprep.subr.mxu0 0.0
    %263 = vmatpush1.msra.mxu0 0.0
    %264 = vmatprep.subr.mxu0 0.0
    %265 = vmatpush1.msra.mxu0 0.0
    %266 = vmatprep.subr.mxu0 0.0
    %267 = vmatpush1.msra.mxu0 0.0
    %268 = vmatprep.subr.mxu0 0.0
    %269 = vmatpush1.msra.mxu0 0.0
    %270 = vmatprep.subr.mxu0 0.0
    %271 = vmatpush1.msra.mxu0 0.0
    %272 = vmatprep.subr.mxu0 0.0
    %273 = vmatpush1.msra.mxu0 0.0
    %274 = vmatprep.subr.mxu0 0.0
    %275 = vmatpush1.msra.mxu0 0.0
    %276 = vmatprep.subr.mxu0 0.0
    %277 = vmatpush1.msra.mxu0 0.0
    %278 = vmatprep.subr.mxu0 0.0
    %279 = vmatpush1.msra.mxu0 0.0
    %280 = vmatprep.subr.mxu0 0.0
    %281 = vmatpush1.msra.mxu0 0.0
    %282 = vmatprep.subr.mxu0 0.0
    %283 = vmatpush1.msra.mxu0 0.0
    %284 = vmatprep.subr.mxu0 0.0
    %285 = vmatpush1.msra.mxu0 0.0
    %286 = vmatprep.subr.mxu0 0.0
    %287 = vmatpush1.msra.mxu0 0.0
    %288 = vmatprep.subr.mxu0 0.0
    %289 = vmatpush1.msra.mxu0 0.0
    %290 = vmatprep.subr.mxu0 0.0
    %291 = vmatpush1.msra.mxu0 0.0
    %292 = vmatprep.subr.mxu0 0.0
    %293 = vmatpush1.msra.mxu0 0.0
    %294 = vmatprep.subr.mxu0 0.0
    %295 = vmatpush1.msra.mxu0 0.0
    %296 = vmatprep.subr.mxu0 0.0
    %297 = vmatpush1.msra.mxu0 0.0
    %298 = vmatprep.subr.mxu0 0.0
    %299 = vmatpush1.msra.mxu0 0.0
    %300 = vmatprep.subr.mxu0 0.0
    %301 = vmatpush1.msra.mxu0 0.0
    %302 = vmatprep.subr.mxu0 0.0
    %303 = vmatpush1.msra.mxu0 0.0
    %304 = vmatprep.subr.mxu0 0.0
    %305 = vmatpush1.msra.mxu0 0.0
    %306 = vmatprep.mubr.f32.mxu0 0.0
    %307 = vmatmul.mubr.f32.gmra.mrb[0].mxu0 %v94
    %v308 = vpop.f32.mrb[0].mxu0
    %v309 = vadd.f32 %v240, %v308
    %v310 = vpop.f32.mrb[0].mxu0
    %311 = vmatprep.mubr.f32.mxu0 0.0
    %312 = vmatmul.mubr.f32.gmra.mrb[0].mxu0 %v97
    %v313 = vpop.f32.mrb[0].mxu0
    %v314 = vadd.f32 %v240, %v313
    %v315 = vpop.f32.mrb[0].mxu0
    %316 = vmatprep.mubr.f32.mxu0 0.0
    %317 = vmatmul.mubr.f32.gmra.mrb[0].mxu0 %v100
    %v318 = vpop.f32.mrb[0].mxu0
    %v319 = vadd.f32 %v240, %v318
    %v320 = vpop.f32.mrb[0].mxu0
    %321 = vmatprep.mubr.f32.mxu0 0.0
    %322 = vmatmul.mubr.f32.gmra.mrb[0].mxu0 %v103
    %v323 = vpop.f32.mrb[0].mxu0
    %v324 = vadd.f32 %v240, %v323
    %v325 = vpop.f32.mrb[0].mxu0
    %326 = vmatprep.mubr.f32.mxu0 0.0
    %327 = vmatmul.mubr.f32.gmra.mrb[0].mxu0 %v106
    %v328 = vpop.f32.mrb[0].mxu0
    %v329 = vadd.f32 %v240, %v328
    %v330 = vpop.f32.mrb[0].mxu0
    %331 = vmatprep.mubr.f32.mxu0 0.0
    %332 = vmatmul.mubr.f32.gmra.mrb[0].mxu0 %v109
    %v333 = vpop.f32.mrb[0].mxu0
    %v334 = vadd.f32 %v240, %v333
    %v335 = vpop.f32.mrb[0].mxu0
    %336 = vmatprep.mubr.f32.mxu0 0.0
    %337 = vmatmul.mubr.f32.gmra.mrb[0].mxu0 %v112
    %v338 = vpop.f32.mrb[0].mxu0
    %v339 = vadd.f32 %v240, %v338
    %v340 = vpop.f32.mrb[0].mxu0
    %341 = vmatprep.mubr.f32.mxu0 0.0
    %342 = vmatmul.mubr.f32.gmra.mrb[0].mxu0 %v115
    %v343 = vpop.f32.mrb[0].mxu0
    %v344 = vadd.f32 %v240, %v343
    %v345 = vpop.f32.mrb[0].mxu0
    %346 = vdwg.mxu0
    %s347 = scalar_lea.vmem [#allocation2], 64
    %348 = vst.msk [vmem:[%s347] sm:$0xff] %vm222, %v309
    %349 = vst.msk [vmem:[%s347 + $0x8] sm:$0xff] %vm222, %v314
    %350 = vst.msk [vmem:[%s347 + $0x10] sm:$0xff] %vm222, %v319
    %351 = vst.msk [vmem:[%s347 + $0x18] sm:$0xff] %vm222, %v324
    %352 = vst.msk [vmem:[%s347 + $0x20] sm:$0xff] %vm222, %v329
    %353 = vst.msk [vmem:[%s347 + $0x28] sm:$0xff] %vm222, %v334
    %354 = vst.msk [vmem:[%s347 + $0x30] sm:$0xff] %vm222, %v339
    %355 = vst.msk [vmem:[%s347 + $0x38] sm:$0xff] %vm222, %v344
    %s356 = scalar_lea.vmem [#allocation7], 32
    %v357 = vld [vmem:[%s356] sm:$0xff]
    %v358 = vld [vmem:[%s356 + $0x8] sm:$0xff]
    %s359 = scalar_lea.vmem %s3, 2
    %v360 = vld [vmem:[%s359] sm:$0x1]
    %v362 = vlaneseq
    %v363 = vshrl.u32 %v362, 7
    %v364 = vsub.s32 0, %v363
    %v365 = vrot.slane %v360, %v364
    %367 = vmatprep.subr.mxu0 0.0
    %368 = vmatpush1.msra.mxu0 %v357
    %369 = vmatprep.subr.mxu0 0.0
    %370 = vmatpush1.msra.mxu0 %v358
    %371 = vmatprep.subr.mxu0 0.0
    %372 = vmatpush1.msra.mxu0 0.0
    %373 = vmatprep.subr.mxu0 0.0
    %374 = vmatpush1.msra.mxu0 0.0
    %375 = vmatprep.subr.mxu0 0.0
    %376 = vmatpush1.msra.mxu0 0.0
    %377 = vmatprep.subr.mxu0 0.0
    %378 = vmatpush1.msra.mxu0 0.0
    %379 = vmatprep.subr.mxu0 0.0
    %380 = vmatpush1.msra.mxu0 0.0
    %381 = vmatprep.subr.mxu0 0.0
    %382 = vmatpush1.msra.mxu0 0.0
    %383 = vmatprep.subr.mxu0 0.0
    %384 = vmatpush1.msra.mxu0 0.0
    %385 = vmatprep.subr.mxu0 0.0
    %386 = vmatpush1.msra.mxu0 0.0
    %387 = vmatprep.subr.mxu0 0.0
    %388 = vmatpush1.msra.mxu0 0.0
    %389 = vmatprep.subr.mxu0 0.0
    %390 = vmatpush1.msra.mxu0 0.0
    %391 = vmatprep.subr.mxu0 0.0
    %392 = vmatpush1.msra.mxu0 0.0
    %393 = vmatprep.subr.mxu0 0.0
    %394 = vmatpush1.msra.mxu0 0.0
    %395 = vmatprep.subr.mxu0 0.0
    %396 = vmatpush1.msra.mxu0 0.0
    %397 = vmatprep.subr.mxu0 0.0
    %398 = vmatpush1.msra.mxu0 0.0
    %399 = vmatprep.subr.mxu0 0.0
    %400 = vmatpush1.msra.mxu0 0.0
    %401 = vmatprep.subr.mxu0 0.0
    %402 = vmatpush1.msra.mxu0 0.0
    %403 = vmatprep.subr.mxu0 0.0
    %404 = vmatpush1.msra.mxu0 0.0
    %405 = vmatprep.subr.mxu0 0.0
    %406 = vmatpush1.msra.mxu0 0.0
    %407 = vmatprep.subr.mxu0 0.0
    %408 = vmatpush1.msra.mxu0 0.0
    %409 = vmatprep.subr.mxu0 0.0
    %410 = vmatpush1.msra.mxu0 0.0
    %411 = vmatprep.subr.mxu0 0.0
    %412 = vmatpush1.msra.mxu0 0.0
    %413 = vmatprep.subr.mxu0 0.0
    %414 = vmatpush1.msra.mxu0 0.0
    %415 = vmatprep.subr.mxu0 0.0
    %416 = vmatpush1.msra.mxu0 0.0
    %417 = vmatprep.subr.mxu0 0.0
    %418 = vmatpush1.msra.mxu0 0.0
    %419 = vmatprep.subr.mxu0 0.0
    %420 = vmatpush1.msra.mxu0 0.0
    %421 = vmatprep.subr.mxu0 0.0
    %422 = vmatpush1.msra.mxu0 0.0
    %423 = vmatprep.subr.mxu0 0.0
    %424 = vmatpush1.msra.mxu0 0.0
    %425 = vmatprep.subr.mxu0 0.0
    %426 = vmatpush1.msra.mxu0 0.0
    %427 = vmatprep.subr.mxu0 0.0
    %428 = vmatpush1.msra.mxu0 0.0
    %429 = vmatprep.subr.mxu0 0.0
    %430 = vmatpush1.msra.mxu0 0.0
    %431 = vmatprep.mubr.f32.mxu0 0.0
    %432 = vmatmul.mubr.f32.gmra.mrb[0].mxu0 %v94
    %v433 = vpop.f32.mrb[0].mxu0
    %v434 = vadd.f32 %v365, %v433
    %v435 = vpop.f32.mrb[0].mxu0
    %436 = vmatprep.mubr.f32.mxu0 0.0
    %437 = vmatmul.mubr.f32.gmra.mrb[0].mxu0 %v97
    %v438 = vpop.f32.mrb[0].mxu0
    %v439 = vadd.f32 %v365, %v438
    %v440 = vpop.f32.mrb[0].mxu0
    %441 = vmatprep.mubr.f32.mxu0 0.0
    %442 = vmatmul.mubr.f32.gmra.mrb[0].mxu0 %v100
    %v443 = vpop.f32.mrb[0].mxu0
    %v444 = vadd.f32 %v365, %v443
    %v445 = vpop.f32.mrb[0].mxu0
    %446 = vmatprep.mubr.f32.mxu0 0.0
    %447 = vmatmul.mubr.f32.gmra.mrb[0].mxu0 %v103
    %v448 = vpop.f32.mrb[0].mxu0
    %v449 = vadd.f32 %v365, %v448
    %v450 = vpop.f32.mrb[0].mxu0
    %451 = vmatprep.mubr.f32.mxu0 0.0
    %452 = vmatmul.mubr.f32.gmra.mrb[0].mxu0 %v106
    %v453 = vpop.f32.mrb[0].mxu0
    %v454 = vadd.f32 %v365, %v453
    %v455 = vpop.f32.mrb[0].mxu0
    %456 = vmatprep.mubr.f32.mxu0 0.0
    %457 = vmatmul.mubr.f32.gmra.mrb[0].mxu0 %v109
    %v458 = vpop.f32.mrb[0].mxu0
    %v459 = vadd.f32 %v365, %v458
    %v460 = vpop.f32.mrb[0].mxu0
    %461 = vmatprep.mubr.f32.mxu0 0.0
    %462 = vmatmul.mubr.f32.gmra.mrb[0].mxu0 %v112
    %v463 = vpop.f32.mrb[0].mxu0
    %v464 = vadd.f32 %v365, %v463
    %v465 = vpop.f32.mrb[0].mxu0
    %466 = vmatprep.mubr.f32.mxu0 0.0
    %467 = vmatmul.mubr.f32.gmra.mrb[0].mxu0 %v115
    %v468 = vpop.f32.mrb[0].mxu0
    %v469 = vadd.f32 %v365, %v468
    %v470 = vpop.f32.mrb[0].mxu0
    %471 = vdwg.mxu0
    %s472 = scalar_lea.vmem [#allocation2], 128
    %473 = vst.msk [vmem:[%s472] sm:$0xff] %vm222, %v434
    %474 = vst.msk [vmem:[%s472 + $0x8] sm:$0xff] %vm222, %v439
    %475 = vst.msk [vmem:[%s472 + $0x10] sm:$0xff] %vm222, %v444
    %476 = vst.msk [vmem:[%s472 + $0x18] sm:$0xff] %vm222, %v449
    %477 = vst.msk [vmem:[%s472 + $0x20] sm:$0xff] %vm222, %v454
    %478 = vst.msk [vmem:[%s472 + $0x28] sm:$0xff] %vm222, %v459
    %479 = vst.msk [vmem:[%s472 + $0x30] sm:$0xff] %vm222, %v464
    %480 = vst.msk [vmem:[%s472 + $0x38] sm:$0xff] %vm222, %v469
    %s481 = scalar_lea.vmem [#allocation7], 48
    %v482 = vld [vmem:[%s481] sm:$0xff]
    %v483 = vld [vmem:[%s481 + $0x8] sm:$0xff]
    %s484 = scalar_lea.vmem %s3, 3
    %v485 = vld [vmem:[%s484] sm:$0x1]
    %v487 = vlaneseq
    %v488 = vshrl.u32 %v487, 7
    %v489 = vsub.s32 0, %v488
    %v490 = vrot.slane %v485, %v489
    %492 = vmatprep.subr.mxu0 0.0
    %493 = vmatpush1.msra.mxu0 %v482
    %494 = vmatprep.subr.mxu0 0.0
    %495 = vmatpush1.msra.mxu0 %v483
    %496 = vmatprep.subr.mxu0 0.0
    %497 = vmatpush1.msra.mxu0 0.0
    %498 = vmatprep.subr.mxu0 0.0
    %499 = vmatpush1.msra.mxu0 0.0
    %500 = vmatprep.subr.mxu0 0.0
    %501 = vmatpush1.msra.mxu0 0.0
    %502 = vmatprep.subr.mxu0 0.0
    %503 = vmatpush1.msra.mxu0 0.0
    %504 = vmatprep.subr.mxu0 0.0
    %505 = vmatpush1.msra.mxu0 0.0
    %506 = vmatprep.subr.mxu0 0.0
    %507 = vmatpush1.msra.mxu0 0.0
    %508 = vmatprep.subr.mxu0 0.0
    %509 = vmatpush1.msra.mxu0 0.0
    %510 = vmatprep.subr.mxu0 0.0
    %511 = vmatpush1.msra.mxu0 0.0
    %512 = vmatprep.subr.mxu0 0.0
    %513 = vmatpush1.msra.mxu0 0.0
    %514 = vmatprep.subr.mxu0 0.0
    %515 = vmatpush1.msra.mxu0 0.0
    %516 = vmatprep.subr.mxu0 0.0
    %517 = vmatpush1.msra.mxu0 0.0
    %518 = vmatprep.subr.mxu0 0.0
    %519 = vmatpush1.msra.mxu0 0.0
    %520 = vmatprep.subr.mxu0 0.0
    %521 = vmatpush1.msra.mxu0 0.0
    %522 = vmatprep.subr.mxu0 0.0
    %523 = vmatpush1.msra.mxu0 0.0
    %524 = vmatprep.subr.mxu0 0.0
    %525 = vmatpush1.msra.mxu0 0.0
    %526 = vmatprep.subr.mxu0 0.0
    %527 = vmatpush1.msra.mxu0 0.0
    %528 = vmatprep.subr.mxu0 0.0
    %529 = vmatpush1.msra.mxu0 0.0
    %530 = vmatprep.subr.mxu0 0.0
    %531 = vmatpush1.msra.mxu0 0.0
    %532 = vmatprep.subr.mxu0 0.0
    %533 = vmatpush1.msra.mxu0 0.0
    %534 = vmatprep.subr.mxu0 0.0
    %535 = vmatpush1.msra.mxu0 0.0
    %536 = vmatprep.subr.mxu0 0.0
    %537 = vmatpush1.msra.mxu0 0.0
    %538 = vmatprep.subr.mxu0 0.0
    %539 = vmatpush1.msra.mxu0 0.0
    %540 = vmatprep.subr.mxu0 0.0
    %541 = vmatpush1.msra.mxu0 0.0
    %542 = vmatprep.subr.mxu0 0.0
    %543 = vmatpush1.msra.mxu0 0.0
    %544 = vmatprep.subr.mxu0 0.0
    %545 = vmatpush1.msra.mxu0 0.0
    %546 = vmatprep.subr.mxu0 0.0
    %547 = vmatpush1.msra.mxu0 0.0
    %548 = vmatprep.subr.mxu0 0.0
    %549 = vmatpush1.msra.mxu0 0.0
    %550 = vmatprep.subr.mxu0 0.0
    %551 = vmatpush1.msra.mxu0 0.0
    %552 = vmatprep.subr.mxu0 0.0
    %553 = vmatpush1.msra.mxu0 0.0
    %554 = vmatprep.subr.mxu0 0.0
    %555 = vmatpush1.msra.mxu0 0.0
    %556 = vmatprep.mubr.f32.mxu0 0.0
    %557 = vmatmul.mubr.f32.gmra.mrb[0].mxu0 %v94
    %v558 = vpop.f32.mrb[0].mxu0
    %v559 = vadd.f32 %v490, %v558
    %v560 = vpop.f32.mrb[0].mxu0
    %561 = vmatprep.mubr.f32.mxu0 0.0
    %562 = vmatmul.mubr.f32.gmra.mrb[0].mxu0 %v97
    %v563 = vpop.f32.mrb[0].mxu0
    %v564 = vadd.f32 %v490, %v563
    %v565 = vpop.f32.mrb[0].mxu0
    %566 = vmatprep.mubr.f32.mxu0 0.0
    %567 = vmatmul.mubr.f32.gmra.mrb[0].mxu0 %v100
    %v568 = vpop.f32.mrb[0].mxu0
    %v569 = vadd.f32 %v490, %v568
    %v570 = vpop.f32.mrb[0].mxu0
    %571 = vmatprep.mubr.f32.mxu0 0.0
    %572 = vmatmul.mubr.f32.gmra.mrb[0].mxu0 %v103
    %v573 = vpop.f32.mrb[0].mxu0
    %v574 = vadd.f32 %v490, %v573
    %v575 = vpop.f32.mrb[0].mxu0
    %576 = vmatprep.mubr.f32.mxu0 0.0
    %577 = vmatmul.mubr.f32.gmra.mrb[0].mxu0 %v106
    %v578 = vpop.f32.mrb[0].mxu0
    %v579 = vadd.f32 %v490, %v578
    %v580 = vpop.f32.mrb[0].mxu0
    %581 = vmatprep.mubr.f32.mxu0 0.0
    %582 = vmatmul.mubr.f32.gmra.mrb[0].mxu0 %v109
    %v583 = vpop.f32.mrb[0].mxu0
    %v584 = vadd.f32 %v490, %v583
    %v585 = vpop.f32.mrb[0].mxu0
    %586 = vmatprep.mubr.f32.mxu0 0.0
    %587 = vmatmul.mubr.f32.gmra.mrb[0].mxu0 %v112
    %v588 = vpop.f32.mrb[0].mxu0
    %v589 = vadd.f32 %v490, %v588
    %v590 = vpop.f32.mrb[0].mxu0
    %591 = vmatprep.mubr.f32.mxu0 0.0
    %592 = vmatmul.mubr.f32.gmra.mrb[0].mxu0 %v115
    %v593 = vpop.f32.mrb[0].mxu0
    %v594 = vadd.f32 %v490, %v593
    %v595 = vpop.f32.mrb[0].mxu0
    %596 = vdwg.mxu0
    %s597 = scalar_lea.vmem [#allocation2], 192
    %598 = vst.msk [vmem:[%s597] sm:$0xff] %vm222, %v559
    %599 = vst.msk [vmem:[%s597 + $0x8] sm:$0xff] %vm222, %v564
    %600 = vst.msk [vmem:[%s597 + $0x10] sm:$0xff] %vm222, %v569
    %601 = vst.msk [vmem:[%s597 + $0x18] sm:$0xff] %vm222, %v574
    %602 = vst.msk [vmem:[%s597 + $0x20] sm:$0xff] %vm222, %v579
    %603 = vst.msk [vmem:[%s597 + $0x28] sm:$0xff] %vm222, %v584
    %604 = vst.msk [vmem:[%s597 + $0x30] sm:$0xff] %vm222, %v589
    %605 = vst.msk [vmem:[%s597 + $0x38] sm:$0xff] %vm222, %v594
    %v606 = vld [vmem:[%s2] sm:$0xff]
    %v607 = vld [vmem:[%s2 + $0x8] sm:$0xff]
    %v608 = vld [vmem:[%s2 + $0x10] sm:$0xff]
    %v609 = vld [vmem:[%s2 + $0x18] sm:$0xff]
    %s610 = scalar_lea.vmem %s2, 32
    %v611 = vld [vmem:[%s610] sm:$0xff]
    %v612 = vld [vmem:[%s610 + $0x8] sm:$0xff]
    %v613 = vld [vmem:[%s610 + $0x10] sm:$0xff]
    %v614 = vld [vmem:[%s610 + $0x18] sm:$0xff]
    %s615 = scalar_lea.vmem %s2, 64
    %v616 = vld [vmem:[%s615] sm:$0xff]
    %v617 = vld [vmem:[%s615 + $0x8] sm:$0xff]
    %v618 = vld [vmem:[%s615 + $0x10] sm:$0xff]
    %v619 = vld [vmem:[%s615 + $0x18] sm:$0xff]
    %s620 = scalar_lea.vmem %s2, 96
    %v621 = vld [vmem:[%s620] sm:$0xff]
    %v622 = vld [vmem:[%s620 + $0x8] sm:$0xff]
    %v623 = vld [vmem:[%s620 + $0x10] sm:$0xff]
    %v624 = vld [vmem:[%s620 + $0x18] sm:$0xff]
    %625 = vst.msk [vmem:[#allocation4] sm:$0xff] %vm222, 0.0
    %626 = vst.msk [vmem:[#allocation5] sm:$0xff] %vm222, 0.0
    loop: start=0, step=1, limit=8
    $region50: #{predictor_forward.1} parent=1 // loop_pre_header
      _
    $region51: #{predictor_forward.1} parent=1 // loop_header
      %s628 = sphi 0, %s632
      %p629 = scmp.ge.s32.totalorder %s628, 8
    $region52: #{predictor_forward.1} parent=1 // loop_header_branch
      %631 = sbr.rel (%p629) target = $region56
    $region53: #{predictor_forward.1} parent=1 // loop_body
      %s633 = smul.u32 %s628, 8
      %v634 = vld [vmem:[#allocation4] sm:$0xff]
      %v635 = vld [vmem:[#allocation5] sm:$0xff]
      %s636 = scalar_lea.vmem [#allocation2], %s633
      %v637 = vld [vmem:[%s636] sm:$0xff]
      %v639 = vsel %vm222, %v634, 0
      %641 = vmatprep.subr.mxu0 0.0
      %642 = vmatpush1.msra.mxu0 %v606
      %643 = vmatprep.subr.mxu0 0.0
      %644 = vmatpush1.msra.mxu0 %v607
      %645 = vmatprep.subr.mxu0 0.0
      %646 = vmatpush1.msra.mxu0 %v608
      %647 = vmatprep.subr.mxu0 0.0
      %648 = vmatpush1.msra.mxu0 %v609
      %649 = vmatprep.subr.mxu0 0.0
      %650 = vmatpush1.msra.mxu0 0.0
      %651 = vmatprep.subr.mxu0 0.0
      %652 = vmatpush1.msra.mxu0 0.0
      %653 = vmatprep.subr.mxu0 0.0
      %654 = vmatpush1.msra.mxu0 0.0
      %655 = vmatprep.subr.mxu0 0.0
      %656 = vmatpush1.msra.mxu0 0.0
      %657 = vmatprep.subr.mxu0 0.0
      %658 = vmatpush1.msra.mxu0 0.0
      %659 = vmatprep.subr.mxu0 0.0
      %660 = vmatpush1.msra.mxu0 0.0
      %661 = vmatprep.subr.mxu0 0.0
      %662 = vmatpush1.msra.mxu0 0.0
      %663 = vmatprep.subr.mxu0 0.0
      %664 = vmatpush1.msra.mxu0 0.0
      %665 = vmatprep.subr.mxu0 0.0
      %666 = vmatpush1.msra.mxu0 0.0
      %667 = vmatprep.subr.mxu0 0.0
      %668 = vmatpush1.msra.mxu0 0.0
      %669 = vmatprep.subr.mxu0 0.0
      %670 = vmatpush1.msra.mxu0 0.0
      %671 = vmatprep.subr.mxu0 0.0
      %672 = vmatpush1.msra.mxu0 0.0
      %673 = vmatprep.subr.mxu0 0.0
      %674 = vmatpush1.msra.mxu0 0.0
      %675 = vmatprep.subr.mxu0 0.0
      %676 = vmatpush1.msra.mxu0 0.0
      %677 = vmatprep.subr.mxu0 0.0
      %678 = vmatpush1.msra.mxu0 0.0
      %679 = vmatprep.subr.mxu0 0.0
      %680 = vmatpush1.msra.mxu0 0.0
      %681 = vmatprep.subr.mxu0 0.0
      %682 = vmatpush1.msra.mxu0 0.0
      %683 = vmatprep.subr.mxu0 0.0
      %684 = vmatpush1.msra.mxu0 0.0
      %685 = vmatprep.subr.mxu0 0.0
      %686 = vmatpush1.msra.mxu0 0.0
      %687 = vmatprep.subr.mxu0 0.0
      %688 = vmatpush1.msra.mxu0 0.0
      %689 = vmatprep.subr.mxu0 0.0
      %690 = vmatpush1.msra.mxu0 0.0
      %691 = vmatprep.subr.mxu0 0.0
      %692 = vmatpush1.msra.mxu0 0.0
      %693 = vmatprep.subr.mxu0 0.0
      %694 = vmatpush1.msra.mxu0 0.0
      %695 = vmatprep.subr.mxu0 0.0
      %696 = vmatpush1.msra.mxu0 0.0
      %697 = vmatprep.subr.mxu0 0.0
      %698 = vmatpush1.msra.mxu0 0.0
      %699 = vmatprep.subr.mxu0 0.0
      %700 = vmatpush1.msra.mxu0 0.0
      %701 = vmatprep.subr.mxu0 0.0
      %702 = vmatpush1.msra.mxu0 0.0
      %703 = vmatprep.subr.mxu0 0.0
      %704 = vmatpush1.msra.mxu0 0.0
      %705 = vmatprep.mubr.f32.mxu0 0.0
      %706 = vmatmul.mubr.f32.gmra.mrb[0].mxu0 %v639
      %v707 = vpop.f32.mrb[0].mxu0
      %v708 = vadd.f32 0.0, %v707
      %v709 = vpop.f32.mrb[0].mxu0
      %710 = vdwg.mxu0
      %v711 = vadd.f32 %v637, %v708
      %s712 = sadd.s32 %s633, 64
      %s713 = scalar_lea.vmem [#allocation2], %s712
      %v714 = vld [vmem:[%s713] sm:$0xff]
      %715 = vmatprep.subr.mxu0 0.0
      %716 = vmatpush1.msra.mxu0 %v611
      %717 = vmatprep.subr.mxu0 0.0
      %718 = vmatpush1.msra.mxu0 %v612
      %719 = vmatprep.subr.mxu0 0.0
      %720 = vmatpush1.msra.mxu0 %v613
      %721 = vmatprep.subr.mxu0 0.0
      %722 = vmatpush1.msra.mxu0 %v614
      %723 = vmatprep.subr.mxu0 0.0
      %724 = vmatpush1.msra.mxu0 0.0
      %725 = vmatprep.subr.mxu0 0.0
      %726 = vmatpush1.msra.mxu0 0.0
      %727 = vmatprep.subr.mxu0 0.0
      %728 = vmatpush1.msra.mxu0 0.0
      %729 = vmatprep.subr.mxu0 0.0
      %730 = vmatpush1.msra.mxu0 0.0
      %731 = vmatprep.subr.mxu0 0.0
      %732 = vmatpush1.msra.mxu0 0.0
      %733 = vmatprep.subr.mxu0 0.0
      %734 = vmatpush1.msra.mxu0 0.0
      %735 = vmatprep.subr.mxu0 0.0
      %736 = vmatpush1.msra.mxu0 0.0
      %737 = vmatprep.subr.mxu0 0.0
      %738 = vmatpush1.msra.mxu0 0.0
      %739 = vmatprep.subr.mxu0 0.0
      %740 = vmatpush1.msra.mxu0 0.0
      %741 = vmatprep.subr.mxu0 0.0
      %742 = vmatpush1.msra.mxu0 0.0
      %743 = vmatprep.subr.mxu0 0.0
      %744 = vmatpush1.msra.mxu0 0.0
      %745 = vmatprep.subr.mxu0 0.0
      %746 = vmatpush1.msra.mxu0 0.0
      %747 = vmatprep.subr.mxu0 0.0
      %748 = vmatpush1.msra.mxu0 0.0
      %749 = vmatprep.subr.mxu0 0.0
      %750 = vmatpush1.msra.mxu0 0.0
      %751 = vmatprep.subr.mxu0 0.0
      %752 = vmatpush1.msra.mxu0 0.0
      %753 = vmatprep.subr.mxu0 0.0
      %754 = vmatpush1.msra.mxu0 0.0
      %755 = vmatprep.subr.mxu0 0.0
      %756 = vmatpush1.msra.mxu0 0.0
      %757 = vmatprep.subr.mxu0 0.0
      %758 = vmatpush1.msra.mxu0 0.0
      %759 = vmatprep.subr.mxu0 0.0
      %760 = vmatpush1.msra.mxu0 0.0
      %761 = vmatprep.subr.mxu0 0.0
      %762 = vmatpush1.msra.mxu0 0.0
      %763 = vmatprep.subr.mxu0 0.0
      %764 = vmatpush1.msra.mxu0 0.0
      %765 = vmatprep.subr.mxu0 0.0
      %766 = vmatpush1.msra.mxu0 0.0
      %767 = vmatprep.subr.mxu0 0.0
      %768 = vmatpush1.msra.mxu0 0.0
      %769 = vmatprep.subr.mxu0 0.0
      %770 = vmatpush1.msra.mxu0 0.0
      %771 = vmatprep.subr.mxu0 0.0
      %772 = vmatpush1.msra.mxu0 0.0
      %773 = vmatprep.subr.mxu0 0.0
      %774 = vmatpush1.msra.mxu0 0.0
      %775 = vmatprep.subr.mxu0 0.0
      %776 = vmatpush1.msra.mxu0 0.0
      %777 = vmatprep.subr.mxu0 0.0
      %778 = vmatpush1.msra.mxu0 0.0
      %779 = vmatprep.mubr.f32.mxu0 0.0
      %780 = vmatmul.mubr.f32.gmra.mrb[0].mxu0 %v639
      %v781 = vpop.f32.mrb[0].mxu0
      %v782 = vadd.f32 0.0, %v781
      %v783 = vpop.f32.mrb[0].mxu0
      %784 = vdwg.mxu0
      %v785 = vadd.f32 %v714, %v782
      %s786 = sadd.s32 %s633, 128
      %s787 = scalar_lea.vmem [#allocation2], %s786
      %v788 = vld [vmem:[%s787] sm:$0xff]
      %789 = vmatprep.subr.mxu0 0.0
      %790 = vmatpush1.msra.mxu0 %v616
      %791 = vmatprep.subr.mxu0 0.0
      %792 = vmatpush1.msra.mxu0 %v617
      %793 = vmatprep.subr.mxu0 0.0
      %794 = vmatpush1.msra.mxu0 %v618
      %795 = vmatprep.subr.mxu0 0.0
      %796 = vmatpush1.msra.mxu0 %v619
      %797 = vmatprep.subr.mxu0 0.0
      %798 = vmatpush1.msra.mxu0 0.0
      %799 = vmatprep.subr.mxu0 0.0
      %800 = vmatpush1.msra.mxu0 0.0
      %801 = vmatprep.subr.mxu0 0.0
      %802 = vmatpush1.msra.mxu0 0.0
      %803 = vmatprep.subr.mxu0 0.0
      %804 = vmatpush1.msra.mxu0 0.0
      %805 = vmatprep.subr.mxu0 0.0
      %806 = vmatpush1.msra.mxu0 0.0
      %807 = vmatprep.subr.mxu0 0.0
      %808 = vmatpush1.msra.mxu0 0.0
      %809 = vmatprep.subr.mxu0 0.0
      %810 = vmatpush1.msra.mxu0 0.0
      %811 = vmatprep.subr.mxu0 0.0
      %812 = vmatpush1.msra.mxu0 0.0
      %813 = vmatprep.subr.mxu0 0.0
      %814 = vmatpush1.msra.mxu0 0.0
      %815 = vmatprep.subr.mxu0 0.0
      %816 = vmatpush1.msra.mxu0 0.0
      %817 = vmatprep.subr.mxu0 0.0
      %818 = vmatpush1.msra.mxu0 0.0
      %819 = vmatprep.subr.mxu0 0.0
      %820 = vmatpush1.msra.mxu0 0.0
      %821 = vmatprep.subr.mxu0 0.0
      %822 = vmatpush1.msra.mxu0 0.0
      %823 = vmatprep.subr.mxu0 0.0
      %824 = vmatpush1.msra.mxu0 0.0
      %825 = vmatprep.subr.mxu0 0.0
      %826 = vmatpush1.msra.mxu0 0.0
      %827 = vmatprep.subr.mxu0 0.0
      %828 = vmatpush1.msra.mxu0 0.0
      %829 = vmatprep.subr.mxu0 0.0
      %830 = vmatpush1.msra.mxu0 0.0
      %831 = vmatprep.subr.mxu0 0.0
      %832 = vmatpush1.msra.mxu0 0.0
      %833 = vmatprep.subr.mxu0 0.0
      %834 = vmatpush1.msra.mxu0 0.0
      %835 = vmatprep.subr.mxu0 0.0
      %836 = vmatpush1.msra.mxu0 0.0
      %837 = vmatprep.subr.mxu0 0.0
      %838 = vmatpush1.msra.mxu0 0.0
      %839 = vmatprep.subr.mxu0 0.0
      %840 = vmatpush1.msra.mxu0 0.0
      %841 = vmatprep.subr.mxu0 0.0
      %842 = vmatpush1.msra.mxu0 0.0
      %843 = vmatprep.subr.mxu0 0.0
      %844 = vmatpush1.msra.mxu0 0.0
      %845 = vmatprep.subr.mxu0 0.0
      %846 = vmatpush1.msra.mxu0 0.0
      %847 = vmatprep.subr.mxu0 0.0
      %848 = vmatpush1.msra.mxu0 0.0
      %849 = vmatprep.subr.mxu0 0.0
      %850 = vmatpush1.msra.mxu0 0.0
      %851 = vmatprep.subr.mxu0 0.0
      %852 = vmatpush1.msra.mxu0 0.0
      %853 = vmatprep.mubr.f32.mxu0 0.0
      %854 = vmatmul.mubr.f32.gmra.mrb[0].mxu0 %v639
      %v855 = vpop.f32.mrb[0].mxu0
      %v856 = vadd.f32 0.0, %v855
      %v857 = vpop.f32.mrb[0].mxu0
      %858 = vdwg.mxu0
      %v859 = vadd.f32 %v788, %v856
      %s860 = sadd.s32 %s633, 192
      %s861 = scalar_lea.vmem [#allocation2], %s860
      %v862 = vld [vmem:[%s861] sm:$0xff]
      %863 = vmatprep.subr.mxu0 0.0
      %864 = vmatpush1.msra.mxu0 %v621
      %865 = vmatprep.subr.mxu0 0.0
      %866 = vmatpush1.msra.mxu0 %v622
      %867 = vmatprep.subr.mxu0 0.0
      %868 = vmatpush1.msra.mxu0 %v623
      %869 = vmatprep.subr.mxu0 0.0
      %870 = vmatpush1.msra.mxu0 %v624
      %871 = vmatprep.subr.mxu0 0.0
      %872 = vmatpush1.msra.mxu0 0.0
      %873 = vmatprep.subr.mxu0 0.0
      %874 = vmatpush1.msra.mxu0 0.0
      %875 = vmatprep.subr.mxu0 0.0
      %876 = vmatpush1.msra.mxu0 0.0
      %877 = vmatprep.subr.mxu0 0.0
      %878 = vmatpush1.msra.mxu0 0.0
      %879 = vmatprep.subr.mxu0 0.0
      %880 = vmatpush1.msra.mxu0 0.0
      %881 = vmatprep.subr.mxu0 0.0
      %882 = vmatpush1.msra.mxu0 0.0
      %883 = vmatprep.subr.mxu0 0.0
      %884 = vmatpush1.msra.mxu0 0.0
      %885 = vmatprep.subr.mxu0 0.0
      %886 = vmatpush1.msra.mxu0 0.0
      %887 = vmatprep.subr.mxu0 0.0
      %888 = vmatpush1.msra.mxu0 0.0
      %889 = vmatprep.subr.mxu0 0.0
      %890 = vmatpush1.msra.mxu0 0.0
      %891 = vmatprep.subr.mxu0 0.0
      %892 = vmatpush1.msra.mxu0 0.0
      %893 = vmatprep.subr.mxu0 0.0
      %894 = vmatpush1.msra.mxu0 0.0
      %895 = vmatprep.subr.mxu0 0.0
      %896 = vmatpush1.msra.mxu0 0.0
      %897 = vmatprep.subr.mxu0 0.0
      %898 = vmatpush1.msra.mxu0 0.0
      %899 = vmatprep.subr.mxu0 0.0
      %900 = vmatpush1.msra.mxu0 0.0
      %901 = vmatprep.subr.mxu0 0.0
      %902 = vmatpush1.msra.mxu0 0.0
      %903 = vmatprep.subr.mxu0 0.0
      %904 = vmatpush1.msra.mxu0 0.0
      %905 = vmatprep.subr.mxu0 0.0
      %906 = vmatpush1.msra.mxu0 0.0
      %907 = vmatprep.subr.mxu0 0.0
      %908 = vmatpush1.msra.mxu0 0.0
      %909 = vmatprep.subr.mxu0 0.0
      %910 = vmatpush1.msra.mxu0 0.0
      %911 = vmatprep.subr.mxu0 0.0
      %912 = vmatpush1.msra.mxu0 0.0
      %913 = vmatprep.subr.mxu0 0.0
      %914 = vmatpush1.msra.mxu0 0.0
      %915 = vmatprep.subr.mxu0 0.0
      %916 = vmatpush1.msra.mxu0 0.0
      %917 = vmatprep.subr.mxu0 0.0
      %918 = vmatpush1.msra.mxu0 0.0
      %919 = vmatprep.subr.mxu0 0.0
      %920 = vmatpush1.msra.mxu0 0.0
      %921 = vmatprep.subr.mxu0 0.0
      %922 = vmatpush1.msra.mxu0 0.0
      %923 = vmatprep.subr.mxu0 0.0
      %924 = vmatpush1.msra.mxu0 0.0
      %925 = vmatprep.subr.mxu0 0.0
      %926 = vmatpush1.msra.mxu0 0.0
      %927 = vmatprep.mubr.f32.mxu0 0.0
      %928 = vmatmul.mubr.f32.gmra.mrb[0].mxu0 %v639
      %v929 = vpop.f32.mrb[0].mxu0
      %v930 = vadd.f32 0.0, %v929
      %v931 = vpop.f32.mrb[0].mxu0
      %932 = vdwg.mxu0
      %v933 = vadd.f32 %v862, %v930
      %v934 = vxor.u32 %v711, 2147483648
      %v935 = vmul.f32 %v934, 1.442695
      %v936 = vpow.pop %v935
      %v937 = vadd.f32 %v936, 1.0
      %v938 = vrcp.pop %v937
      %v939 = vmul.f32 1.0, %v938
      %v940 = vxor.u32 %v785, 2147483648
      %v941 = vmul.f32 %v940, 1.442695
      %v942 = vpow.pop %v941
      %v943 = vadd.f32 %v942, 1.0
      %v944 = vrcp.pop %v943
      %v945 = vmul.f32 1.0, %v944
      %v946 = vtanh.pop %v859
      %v947 = vxor.u32 %v933, 2147483648
      %v948 = vmul.f32 %v947, 1.442695
      %v949 = vpow.pop %v948
      %v950 = vadd.f32 %v949, 1.0
      %v951 = vrcp.pop %v950
      %v952 = vmul.f32 1.0, %v951
      %v953 = vmul.f32 %v945, %v635
      %v954 = vmul.f32 %v939, %v946
      %v955 = vadd.f32 %v953, %v954
      %v956 = vtanh.pop %v955
      %v957 = vmul.f32 %v952, %v956
      %958 = vst.msk [vmem:[#allocation5] sm:$0xff] %vm222, %v955
      %959 = vst.msk [vmem:[#allocation4] sm:$0xff] %vm222, %v957
      %s960 = scalar_lea.vmem [#allocation3], %s633
      %961 = vst.msk [vmem:[%s960] sm:$0xff] %vm222, %v957
    $region54: #{predictor_forward.1} parent=1 // loop_footer
      %s632 = sadd.s32 1, %s628
    $region55: #{predictor_forward.1} parent=1 // loop_footer_branch
      %627 = sbr.rel target = $region51
    $region56: #{predictor_forward.1} parent=1 // loop_exit
      _
    %v962 = vld [vmem:[#allocation3] sm:$0xff]
    %v963 = vld [vmem:[#allocation3 + $0x8] sm:$0xff]
    %v964 = vld [vmem:[#allocation3 + $0x10] sm:$0xff]
    %v965 = vld [vmem:[#allocation3 + $0x18] sm:$0xff]
    %v966 = vld [vmem:[#allocation3 + $0x20] sm:$0xff]
    %v967 = vld [vmem:[#allocation3 + $0x28] sm:$0xff]
    %v968 = vld [vmem:[#allocation3 + $0x30] sm:$0xff]
    %v969 = vld [vmem:[#allocation3 + $0x38] sm:$0xff]
    %v970 = vld [vmem:[#allocation9] sm:$0xff]
    %v971 = vld [vmem:[#allocation9 + $0x8] sm:$0xff]
    %v972 = vld [vmem:[#allocation9 + $0x10] sm:$0xff]
    %v973 = vld [vmem:[#allocation9 + $0x18] sm:$0xff]
    %v974 = vld [vmem:[%s6] sm:$0x1]
    %v976 = vlaneseq
    %v977 = vshrl.u32 %v976, 7
    %v978 = vsub.s32 0, %v977
    %v979 = vrot.slane %v974, %v978
    %v982 = vsel %vm222, %v962, 0
    %v985 = vsel %vm222, %v963, 0
    %v988 = vsel %vm222, %v964, 0
    %v991 = vsel %vm222, %v965, 0
    %v994 = vsel %vm222, %v966, 0
    %v997 = vsel %vm222, %v967, 0
    %v1000 = vsel %vm222, %v968, 0
    %v1003 = vsel %vm222, %v969, 0
    %1005 = vmatprep.subr.mxu0 0.0
    %1006 = vmatpush1.msra.mxu0 %v970
    %1007 = vmatprep.subr.mxu0 0.0
    %1008 = vmatpush1.msra.mxu0 %v971
    %1009 = vmatprep.subr.mxu0 0.0
    %1010 = vmatpush1.msra.mxu0 %v972
    %1011 = vmatprep.subr.mxu0 0.0
    %1012 = vmatpush1.msra.mxu0 %v973
    %1013 = vmatprep.subr.mxu0 0.0
    %1014 = vmatpush1.msra.mxu0 0.0
    %1015 = vmatprep.subr.mxu0 0.0
    %1016 = vmatpush1.msra.mxu0 0.0
    %1017 = vmatprep.subr.mxu0 0.0
    %1018 = vmatpush1.msra.mxu0 0.0
    %1019 = vmatprep.subr.mxu0 0.0
    %1020 = vmatpush1.msra.mxu0 0.0
    %1021 = vmatprep.subr.mxu0 0.0
    %1022 = vmatpush1.msra.mxu0 0.0
    %1023 = vmatprep.subr.mxu0 0.0
    %1024 = vmatpush1.msra.mxu0 0.0
    %1025 = vmatprep.subr.mxu0 0.0
    %1026 = vmatpush1.msra.mxu0 0.0
    %1027 = vmatprep.subr.mxu0 0.0
    %1028 = vmatpush1.msra.mxu0 0.0
    %1029 = vmatprep.subr.mxu0 0.0
    %1030 = vmatpush1.msra.mxu0 0.0
    %1031 = vmatprep.subr.mxu0 0.0
    %1032 = vmatpush1.msra.mxu0 0.0
    %1033 = vmatprep.subr.mxu0 0.0
    %1034 = vmatpush1.msra.mxu0 0.0
    %1035 = vmatprep.subr.mxu0 0.0
    %1036 = vmatpush1.msra.mxu0 0.0
    %1037 = vmatprep.subr.mxu0 0.0
    %1038 = vmatpush1.msra.mxu0 0.0
    %1039 = vmatprep.subr.mxu0 0.0
    %1040 = vmatpush1.msra.mxu0 0.0
    %1041 = vmatprep.subr.mxu0 0.0
    %1042 = vmatpush1.msra.mxu0 0.0
    %1043 = vmatprep.subr.mxu0 0.0
    %1044 = vmatpush1.msra.mxu0 0.0
    %1045 = vmatprep.subr.mxu0 0.0
    %1046 = vmatpush1.msra.mxu0 0.0
    %1047 = vmatprep.subr.mxu0 0.0
    %1048 = vmatpush1.msra.mxu0 0.0
    %1049 = vmatprep.subr.mxu0 0.0
    %1050 = vmatpush1.msra.mxu0 0.0
    %1051 = vmatprep.subr.mxu0 0.0
    %1052 = vmatpush1.msra.mxu0 0.0
    %1053 = vmatprep.subr.mxu0 0.0
    %1054 = vmatpush1.msra.mxu0 0.0
    %1055 = vmatprep.subr.mxu0 0.0
    %1056 = vmatpush1.msra.mxu0 0.0
    %1057 = vmatprep.subr.mxu0 0.0
    %1058 = vmatpush1.msra.mxu0 0.0
    %1059 = vmatprep.subr.mxu0 0.0
    %1060 = vmatpush1.msra.mxu0 0.0
    %1061 = vmatprep.subr.mxu0 0.0
    %1062 = vmatpush1.msra.mxu0 0.0
    %1063 = vmatprep.subr.mxu0 0.0
    %1064 = vmatpush1.msra.mxu0 0.0
    %1065 = vmatprep.subr.mxu0 0.0
    %1066 = vmatpush1.msra.mxu0 0.0
    %1067 = vmatprep.subr.mxu0 0.0
    %1068 = vmatpush1.msra.mxu0 0.0
    %1069 = vmatprep.mubr.f32.mxu0 0.0
    %1070 = vmatmul.mubr.f32.gmra.mrb[0].mxu0 %v982
    %v1071 = vpop.f32.mrb[0].mxu0
    %v1072 = vadd.f32 %v979, %v1071
    %v1073 = vpop.f32.mrb[0].mxu0
    %1074 = vmatprep.mubr.f32.mxu0 0.0
    %1075 = vmatmul.mubr.f32.gmra.mrb[0].mxu0 %v985
    %v1076 = vpop.f32.mrb[0].mxu0
    %v1077 = vadd.f32 %v979, %v1076
    %v1078 = vpop.f32.mrb[0].mxu0
    %1079 = vmatprep.mubr.f32.mxu0 0.0
    %1080 = vmatmul.mubr.f32.gmra.mrb[0].mxu0 %v988
    %v1081 = vpop.f32.mrb[0].mxu0
    %v1082 = vadd.f32 %v979, %v1081
    %v1083 = vpop.f32.mrb[0].mxu0
    %1084 = vmatprep.mubr.f32.mxu0 0.0
    %1085 = vmatmul.mubr.f32.gmra.mrb[0].mxu0 %v991
    %v1086 = vpop.f32.mrb[0].mxu0
    %v1087 = vadd.f32 %v979, %v1086
    %v1088 = vpop.f32.mrb[0].mxu0
    %1089 = vmatprep.mubr.f32.mxu0 0.0
    %1090 = vmatmul.mubr.f32.gmra.mrb[0].mxu0 %v994
    %v1091 = vpop.f32.mrb[0].mxu0
    %v1092 = vadd.f32 %v979, %v1091
    %v1093 = vpop.f32.mrb[0].mxu0
    %1094 = vmatprep.mubr.f32.mxu0 0.0
    %1095 = vmatmul.mubr.f32.gmra.mrb[0].mxu0 %v997
    %v1096 = vpop.f32.mrb[0].mxu0
    %v1097 = vadd.f32 %v979, %v1096
    %v1098 = vpop.f32.mrb[0].mxu0
    %1099 = vmatprep.mubr.f32.mxu0 0.0
    %1100 = vmatmul.mubr.f32.gmra.mrb[0].mxu0 %v1000
    %v1101 = vpop.f32.mrb[0].mxu0
    %v1102 = vadd.f32 %v979, %v1101
    %v1103 = vpop.f32.mrb[0].mxu0
    %1104 = vmatprep.mubr.f32.mxu0 0.0
    %1105 = vmatmul.mubr.f32.gmra.mrb[0].mxu0 %v1003
    %v1106 = vpop.f32.mrb[0].mxu0
    %v1107 = vadd.f32 %v979, %v1106
    %v1108 = vpop.f32.mrb[0].mxu0
    %1109 = vdwg.mxu0
    %1110 = vst.msk [vmem:[#allocation2] sm:$0xff] %vm222, %v1072
    %1111 = vst.msk [vmem:[#allocation2 + $0x8] sm:$0xff] %vm222, %v1077
    %1112 = vst.msk [vmem:[#allocation2 + $0x10] sm:$0xff] %vm222, %v1082
    %1113 = vst.msk [vmem:[#allocation2 + $0x18] sm:$0xff] %vm222, %v1087
    %1114 = vst.msk [vmem:[#allocation2 + $0x20] sm:$0xff] %vm222, %v1092
    %1115 = vst.msk [vmem:[#allocation2 + $0x28] sm:$0xff] %vm222, %v1097
    %1116 = vst.msk [vmem:[#allocation2 + $0x30] sm:$0xff] %vm222, %v1102
    %1117 = vst.msk [vmem:[#allocation2 + $0x38] sm:$0xff] %vm222, %v1107
    %s1118 = scalar_lea.vmem [#allocation9], 32
    %v1119 = vld [vmem:[%s1118] sm:$0xff]
    %v1120 = vld [vmem:[%s1118 + $0x8] sm:$0xff]
    %v1121 = vld [vmem:[%s1118 + $0x10] sm:$0xff]
    %v1122 = vld [vmem:[%s1118 + $0x18] sm:$0xff]
    %s1123 = scalar_lea.vmem %s6, 1
    %v1124 = vld [vmem:[%s1123] sm:$0x1]
    %v1126 = vlaneseq
    %v1127 = vshrl.u32 %v1126, 7
    %v1128 = vsub.s32 0, %v1127
    %v1129 = vrot.slane %v1124, %v1128
    %1131 = vmatprep.subr.mxu0 0.0
    %1132 = vmatpush1.msra.mxu0 %v1119
    %1133 = vmatprep.subr.mxu0 0.0
    %1134 = vmatpush1.msra.mxu0 %v1120
    %1135 = vmatprep.subr.mxu0 0.0
    %1136 = vmatpush1.msra.mxu0 %v1121
    %1137 = vmatprep.subr.mxu0 0.0
    %1138 = vmatpush1.msra.mxu0 %v1122
    %1139 = vmatprep.subr.mxu0 0.0
    %1140 = vmatpush1.msra.mxu0 0.0
    %1141 = vmatprep.subr.mxu0 0.0
    %1142 = vmatpush1.msra.mxu0 0.0
    %1143 = vmatprep.subr.mxu0 0.0
    %1144 = vmatpush1.msra.mxu0 0.0
    %1145 = vmatprep.subr.mxu0 0.0
    %1146 = vmatpush1.msra.mxu0 0.0
    %1147 = vmatprep.subr.mxu0 0.0
    %1148 = vmatpush1.msra.mxu0 0.0
    %1149 = vmatprep.subr.mxu0 0.0
    %1150 = vmatpush1.msra.mxu0 0.0
    %1151 = vmatprep.subr.mxu0 0.0
    %1152 = vmatpush1.msra.mxu0 0.0
    %1153 = vmatprep.subr.mxu0 0.0
    %1154 = vmatpush1.msra.mxu0 0.0
    %1155 = vmatprep.subr.mxu0 0.0
    %1156 = vmatpush1.msra.mxu0 0.0
    %1157 = vmatprep.subr.mxu0 0.0
    %1158 = vmatpush1.msra.mxu0 0.0
    %1159 = vmatprep.subr.mxu0 0.0
    %1160 = vmatpush1.msra.mxu0 0.0
    %1161 = vmatprep.subr.mxu0 0.0
    %1162 = vmatpush1.msra.mxu0 0.0
    %1163 = vmatprep.subr.mxu0 0.0
    %1164 = vmatpush1.msra.mxu0 0.0
    %1165 = vmatprep.subr.mxu0 0.0
    %1166 = vmatpush1.msra.mxu0 0.0
    %1167 = vmatprep.subr.mxu0 0.0
    %1168 = vmatpush1.msra.mxu0 0.0
    %1169 = vmatprep.subr.mxu0 0.0
    %1170 = vmatpush1.msra.mxu0 0.0
    %1171 = vmatprep.subr.mxu0 0.0
    %1172 = vmatpush1.msra.mxu0 0.0
    %1173 = vmatprep.subr.mxu0 0.0
    %1174 = vmatpush1.msra.mxu0 0.0
    %1175 = vmatprep.subr.mxu0 0.0
    %1176 = vmatpush1.msra.mxu0 0.0
    %1177 = vmatprep.subr.mxu0 0.0
    %1178 = vmatpush1.msra.mxu0 0.0
    %1179 = vmatprep.subr.mxu0 0.0
    %1180 = vmatpush1.msra.mxu0 0.0
    %1181 = vmatprep.subr.mxu0 0.0
    %1182 = vmatpush1.msra.mxu0 0.0
    %1183 = vmatprep.subr.mxu0 0.0
    %1184 = vmatpush1.msra.mxu0 0.0
    %1185 = vmatprep.subr.mxu0 0.0
    %1186 = vmatpush1.msra.mxu0 0.0
    %1187 = vmatprep.subr.mxu0 0.0
    %1188 = vmatpush1.msra.mxu0 0.0
    %1189 = vmatprep.subr.mxu0 0.0
    %1190 = vmatpush1.msra.mxu0 0.0
    %1191 = vmatprep.subr.mxu0 0.0
    %1192 = vmatpush1.msra.mxu0 0.0
    %1193 = vmatprep.subr.mxu0 0.0
    %1194 = vmatpush1.msra.mxu0 0.0
    %1195 = vmatprep.mubr.f32.mxu0 0.0
    %1196 = vmatmul.mubr.f32.gmra.mrb[0].mxu0 %v982
    %v1197 = vpop.f32.mrb[0].mxu0
    %v1198 = vadd.f32 %v1129, %v1197
    %v1199 = vpop.f32.mrb[0].mxu0
    %1200 = vmatprep.mubr.f32.mxu0 0.0
    %1201 = vmatmul.mubr.f32.gmra.mrb[0].mxu0 %v985
    %v1202 = vpop.f32.mrb[0].mxu0
    %v1203 = vadd.f32 %v1129, %v1202
    %v1204 = vpop.f32.mrb[0].mxu0
    %1205 = vmatprep.mubr.f32.mxu0 0.0
    %1206 = vmatmul.mubr.f32.gmra.mrb[0].mxu0 %v988
    %v1207 = vpop.f32.mrb[0].mxu0
    %v1208 = vadd.f32 %v1129, %v1207
    %v1209 = vpop.f32.mrb[0].mxu0
    %1210 = vmatprep.mubr.f32.mxu0 0.0
    %1211 = vmatmul.mubr.f32.gmra.mrb[0].mxu0 %v991
    %v1212 = vpop.f32.mrb[0].mxu0
    %v1213 = vadd.f32 %v1129, %v1212
    %v1214 = vpop.f32.mrb[0].mxu0
    %1215 = vmatprep.mubr.f32.mxu0 0.0
    %1216 = vmatmul.mubr.f32.gmra.mrb[0].mxu0 %v994
    %v1217 = vpop.f32.mrb[0].mxu0
    %v1218 = vadd.f32 %v1129, %v1217
    %v1219 = vpop.f32.mrb[0].mxu0
    %1220 = vmatprep.mubr.f32.mxu0 0.0
    %1221 = vmatmul.mubr.f32.gmra.mrb[0].mxu0 %v997
    %v1222 = vpop.f32.mrb[0].mxu0
    %v1223 = vadd.f32 %v1129, %v1222
    %v1224 = vpop.f32.mrb[0].mxu0
    %1225 = vmatprep.mubr.f32.mxu0 0.0
    %1226 = vmatmul.mubr.f32.gmra.mrb[0].mxu0 %v1000
    %v1227 = vpop.f32.mrb[0].mxu0
    %v1228 = vadd.f32 %v1129, %v1227
    %v1229 = vpop.f32.mrb[0].mxu0
    %1230 = vmatprep.mubr.f32.mxu0 0.0
    %1231 = vmatmul.mubr.f32.gmra.mrb[0].mxu0 %v1003
    %v1232 = vpop.f32.mrb[0].mxu0
    %v1233 = vadd.f32 %v1129, %v1232
    %v1234 = vpop.f32.mrb[0].mxu0
    %1235 = vdwg.mxu0
    %1236 = vst.msk [vmem:[%s347] sm:$0xff] %vm222, %v1198
    %1237 = vst.msk [vmem:[%s347 + $0x8] sm:$0xff] %vm222, %v1203
    %1238 = vst.msk [vmem:[%s347 + $0x10] sm:$0xff] %vm222, %v1208
    %1239 = vst.msk [vmem:[%s347 + $0x18] sm:$0xff] %vm222, %v1213
    %1240 = vst.msk [vmem:[%s347 + $0x20] sm:$0xff] %vm222, %v1218
    %1241 = vst.msk [vmem:[%s347 + $0x28] sm:$0xff] %vm222, %v1223
    %1242 = vst.msk [vmem:[%s347 + $0x30] sm:$0xff] %vm222, %v1228
    %1243 = vst.msk [vmem:[%s347 + $0x38] sm:$0xff] %vm222, %v1233
    %s1244 = scalar_lea.vmem [#allocation9], 64
    %v1245 = vld [vmem:[%s1244] sm:$0xff]
    %v1246 = vld [vmem:[%s1244 + $0x8] sm:$0xff]
    %v1247 = vld [vmem:[%s1244 + $0x10] sm:$0xff]
    %v1248 = vld [vmem:[%s1244 + $0x18] sm:$0xff]
    %s1249 = scalar_lea.vmem %s6, 2
    %v1250 = vld [vmem:[%s1249] sm:$0x1]
    %v1252 = vlaneseq
    %v1253 = vshrl.u32 %v1252, 7
    %v1254 = vsub.s32 0, %v1253
    %v1255 = vrot.slane %v1250, %v1254
    %1257 = vmatprep.subr.mxu0 0.0
    %1258 = vmatpush1.msra.mxu0 %v1245
    %1259 = vmatprep.subr.mxu0 0.0
    %1260 = vmatpush1.msra.mxu0 %v1246
    %1261 = vmatprep.subr.mxu0 0.0
    %1262 = vmatpush1.msra.mxu0 %v1247
    %1263 = vmatprep.subr.mxu0 0.0
    %1264 = vmatpush1.msra.mxu0 %v1248
    %1265 = vmatprep.subr.mxu0 0.0
    %1266 = vmatpush1.msra.mxu0 0.0
    %1267 = vmatprep.subr.mxu0 0.0
    %1268 = vmatpush1.msra.mxu0 0.0
    %1269 = vmatprep.subr.mxu0 0.0
    %1270 = vmatpush1.msra.mxu0 0.0
    %1271 = vmatprep.subr.mxu0 0.0
    %1272 = vmatpush1.msra.mxu0 0.0
    %1273 = vmatprep.subr.mxu0 0.0
    %1274 = vmatpush1.msra.mxu0 0.0
    %1275 = vmatprep.subr.mxu0 0.0
    %1276 = vmatpush1.msra.mxu0 0.0
    %1277 = vmatprep.subr.mxu0 0.0
    %1278 = vmatpush1.msra.mxu0 0.0
    %1279 = vmatprep.subr.mxu0 0.0
    %1280 = vmatpush1.msra.mxu0 0.0
    %1281 = vmatprep.subr.mxu0 0.0
    %1282 = vmatpush1.msra.mxu0 0.0
    %1283 = vmatprep.subr.mxu0 0.0
    %1284 = vmatpush1.msra.mxu0 0.0
    %1285 = vmatprep.subr.mxu0 0.0
    %1286 = vmatpush1.msra.mxu0 0.0
    %1287 = vmatprep.subr.mxu0 0.0
    %1288 = vmatpush1.msra.mxu0 0.0
    %1289 = vmatprep.subr.mxu0 0.0
    %1290 = vmatpush1.msra.mxu0 0.0
    %1291 = vmatprep.subr.mxu0 0.0
    %1292 = vmatpush1.msra.mxu0 0.0
    %1293 = vmatprep.subr.mxu0 0.0
    %1294 = vmatpush1.msra.mxu0 0.0
    %1295 = vmatprep.subr.mxu0 0.0
    %1296 = vmatpush1.msra.mxu0 0.0
    %1297 = vmatprep.subr.mxu0 0.0
    %1298 = vmatpush1.msra.mxu0 0.0
    %1299 = vmatprep.subr.mxu0 0.0
    %1300 = vmatpush1.msra.mxu0 0.0
    %1301 = vmatprep.subr.mxu0 0.0
    %1302 = vmatpush1.msra.mxu0 0.0
    %1303 = vmatprep.subr.mxu0 0.0
    %1304 = vmatpush1.msra.mxu0 0.0
    %1305 = vmatprep.subr.mxu0 0.0
    %1306 = vmatpush1.msra.mxu0 0.0
    %1307 = vmatprep.subr.mxu0 0.0
    %1308 = vmatpush1.msra.mxu0 0.0
    %1309 = vmatprep.subr.mxu0 0.0
    %1310 = vmatpush1.msra.mxu0 0.0
    %1311 = vmatprep.subr.mxu0 0.0
    %1312 = vmatpush1.msra.mxu0 0.0
    %1313 = vmatprep.subr.mxu0 0.0
    %1314 = vmatpush1.msra.mxu0 0.0
    %1315 = vmatprep.subr.mxu0 0.0
    %1316 = vmatpush1.msra.mxu0 0.0
    %1317 = vmatprep.subr.mxu0 0.0
    %1318 = vmatpush1.msra.mxu0 0.0
    %1319 = vmatprep.subr.mxu0 0.0
    %1320 = vmatpush1.msra.mxu0 0.0
    %1321 = vmatprep.mubr.f32.mxu0 0.0
    %1322 = vmatmul.mubr.f32.gmra.mrb[0].mxu0 %v982
    %v1323 = vpop.f32.mrb[0].mxu0
    %v1324 = vadd.f32 %v1255, %v1323
    %v1325 = vpop.f32.mrb[0].mxu0
    %1326 = vmatprep.mubr.f32.mxu0 0.0
    %1327 = vmatmul.mubr.f32.gmra.mrb[0].mxu0 %v985
    %v1328 = vpop.f32.mrb[0].mxu0
    %v1329 = vadd.f32 %v1255, %v1328
    %v1330 = vpop.f32.mrb[0].mxu0
    %1331 = vmatprep.mubr.f32.mxu0 0.0
    %1332 = vmatmul.mubr.f32.gmra.mrb[0].mxu0 %v988
    %v1333 = vpop.f32.mrb[0].mxu0
    %v1334 = vadd.f32 %v1255, %v1333
    %v1335 = vpop.f32.mrb[0].mxu0
    %1336 = vmatprep.mubr.f32.mxu0 0.0
    %1337 = vmatmul.mubr.f32.gmra.mrb[0].mxu0 %v991
    %v1338 = vpop.f32.mrb[0].mxu0
    %v1339 = vadd.f32 %v1255, %v1338
    %v1340 = vpop.f32.mrb[0].mxu0
    %1341 = vmatprep.mubr.f32.mxu0 0.0
    %1342 = vmatmul.mubr.f32.gmra.mrb[0].mxu0 %v994
    %v1343 = vpop.f32.mrb[0].mxu0
    %v1344 = vadd.f32 %v1255, %v1343
    %v1345 = vpop.f32.mrb[0].mxu0
    %1346 = vmatprep.mubr.f32.mxu0 0.0
    %1347 = vmatmul.mubr.f32.gmra.mrb[0].mxu0 %v997
    %v1348 = vpop.f32.mrb[0].mxu0
    %v1349 = vadd.f32 %v1255, %v1348
    %v1350 = vpop.f32.mrb[0].mxu0
    %1351 = vmatprep.mubr.f32.mxu0 0.0
    %1352 = vmatmul.mubr.f32.gmra.mrb[0].mxu0 %v1000
    %v1353 = vpop.f32.mrb[0].mxu0
    %v1354 = vadd.f32 %v1255, %v1353
    %v1355 = vpop.f32.mrb[0].mxu0
    %1356 = vmatprep.mubr.f32.mxu0 0.0
    %1357 = vmatmul.mubr.f32.gmra.mrb[0].mxu0 %v1003
    %v1358 = vpop.f32.mrb[0].mxu0
    %v1359 = vadd.f32 %v1255, %v1358
    %v1360 = vpop.f32.mrb[0].mxu0
    %1361 = vdwg.mxu0
    %1362 = vst.msk [vmem:[%s472] sm:$0xff] %vm222, %v1324
    %1363 = vst.msk [vmem:[%s472 + $0x8] sm:$0xff] %vm222, %v1329
    %1364 = vst.msk [vmem:[%s472 + $0x10] sm:$0xff] %vm222, %v1334
    %1365 = vst.msk [vmem:[%s472 + $0x18] sm:$0xff] %vm222, %v1339
    %1366 = vst.msk [vmem:[%s472 + $0x20] sm:$0xff] %vm222, %v1344
    %1367 = vst.msk [vmem:[%s472 + $0x28] sm:$0xff] %vm222, %v1349
    %1368 = vst.msk [vmem:[%s472 + $0x30] sm:$0xff] %vm222, %v1354
    %1369 = vst.msk [vmem:[%s472 + $0x38] sm:$0xff] %vm222, %v1359
    %s1370 = scalar_lea.vmem [#allocation9], 96
    %v1371 = vld [vmem:[%s1370] sm:$0xff]
    %v1372 = vld [vmem:[%s1370 + $0x8] sm:$0xff]
    %v1373 = vld [vmem:[%s1370 + $0x10] sm:$0xff]
    %v1374 = vld [vmem:[%s1370 + $0x18] sm:$0xff]
    %s1375 = scalar_lea.vmem %s6, 3
    %v1376 = vld [vmem:[%s1375] sm:$0x1]
    %v1378 = vlaneseq
    %v1379 = vshrl.u32 %v1378, 7
    %v1380 = vsub.s32 0, %v1379
    %v1381 = vrot.slane %v1376, %v1380
    %1383 = vmatprep.subr.mxu0 0.0
    %1384 = vmatpush1.msra.mxu0 %v1371
    %1385 = vmatprep.subr.mxu0 0.0
    %1386 = vmatpush1.msra.mxu0 %v1372
    %1387 = vmatprep.subr.mxu0 0.0
    %1388 = vmatpush1.msra.mxu0 %v1373
    %1389 = vmatprep.subr.mxu0 0.0
    %1390 = vmatpush1.msra.mxu0 %v1374
    %1391 = vmatprep.subr.mxu0 0.0
    %1392 = vmatpush1.msra.mxu0 0.0
    %1393 = vmatprep.subr.mxu0 0.0
    %1394 = vmatpush1.msra.mxu0 0.0
    %1395 = vmatprep.subr.mxu0 0.0
    %1396 = vmatpush1.msra.mxu0 0.0
    %1397 = vmatprep.subr.mxu0 0.0
    %1398 = vmatpush1.msra.mxu0 0.0
    %1399 = vmatprep.subr.mxu0 0.0
    %1400 = vmatpush1.msra.mxu0 0.0
    %1401 = vmatprep.subr.mxu0 0.0
    %1402 = vmatpush1.msra.mxu0 0.0
    %1403 = vmatprep.subr.mxu0 0.0
    %1404 = vmatpush1.msra.mxu0 0.0
    %1405 = vmatprep.subr.mxu0 0.0
    %1406 = vmatpush1.msra.mxu0 0.0
    %1407 = vmatprep.subr.mxu0 0.0
    %1408 = vmatpush1.msra.mxu0 0.0
    %1409 = vmatprep.subr.mxu0 0.0
    %1410 = vmatpush1.msra.mxu0 0.0
    %1411 = vmatprep.subr.mxu0 0.0
    %1412 = vmatpush1.msra.mxu0 0.0
    %1413 = vmatprep.subr.mxu0 0.0
    %1414 = vmatpush1.msra.mxu0 0.0
    %1415 = vmatprep.subr.mxu0 0.0
    %1416 = vmatpush1.msra.mxu0 0.0
    %1417 = vmatprep.subr.mxu0 0.0
    %1418 = vmatpush1.msra.mxu0 0.0
    %1419 = vmatprep.subr.mxu0 0.0
    %1420 = vmatpush1.msra.mxu0 0.0
    %1421 = vmatprep.subr.mxu0 0.0
    %1422 = vmatpush1.msra.mxu0 0.0
    %1423 = vmatprep.subr.mxu0 0.0
    %1424 = vmatpush1.msra.mxu0 0.0
    %1425 = vmatprep.subr.mxu0 0.0
    %1426 = vmatpush1.msra.mxu0 0.0
    %1427 = vmatprep.subr.mxu0 0.0
    %1428 = vmatpush1.msra.mxu0 0.0
    %1429 = vmatprep.subr.mxu0 0.0
    %1430 = vmatpush1.msra.mxu0 0.0
    %1431 = vmatprep.subr.mxu0 0.0
    %1432 = vmatpush1.msra.mxu0 0.0
    %1433 = vmatprep.subr.mxu0 0.0
    %1434 = vmatpush1.msra.mxu0 0.0
    %1435 = vmatprep.subr.mxu0 0.0
    %1436 = vmatpush1.msra.mxu0 0.0
    %1437 = vmatprep.subr.mxu0 0.0
    %1438 = vmatpush1.msra.mxu0 0.0
    %1439 = vmatprep.subr.mxu0 0.0
    %1440 = vmatpush1.msra.mxu0 0.0
    %1441 = vmatprep.subr.mxu0 0.0
    %1442 = vmatpush1.msra.mxu0 0.0
    %1443 = vmatprep.subr.mxu0 0.0
    %1444 = vmatpush1.msra.mxu0 0.0
    %1445 = vmatprep.subr.mxu0 0.0
    %1446 = vmatpush1.msra.mxu0 0.0
    %1447 = vmatprep.mubr.f32.mxu0 0.0
    %1448 = vmatmul.mubr.f32.gmra.mrb[0].mxu0 %v982
    %v1449 = vpop.f32.mrb[0].mxu0
    %v1450 = vadd.f32 %v1381, %v1449
    %v1451 = vpop.f32.mrb[0].mxu0
    %1452 = vmatprep.mubr.f32.mxu0 0.0
    %1453 = vmatmul.mubr.f32.gmra.mrb[0].mxu0 %v985
    %v1454 = vpop.f32.mrb[0].mxu0
    %v1455 = vadd.f32 %v1381, %v1454
    %v1456 = vpop.f32.mrb[0].mxu0
    %1457 = vmatprep.mubr.f32.mxu0 0.0
    %1458 = vmatmul.mubr.f32.gmra.mrb[0].mxu0 %v988
    %v1459 = vpop.f32.mrb[0].mxu0
    %v1460 = vadd.f32 %v1381, %v1459
    %v1461 = vpop.f32.mrb[0].mxu0
    %1462 = vmatprep.mubr.f32.mxu0 0.0
    %1463 = vmatmul.mubr.f32.gmra.mrb[0].mxu0 %v991
    %v1464 = vpop.f32.mrb[0].mxu0
    %v1465 = vadd.f32 %v1381, %v1464
    %v1466 = vpop.f32.mrb[0].mxu0
    %1467 = vmatprep.mubr.f32.mxu0 0.0
    %1468 = vmatmul.mubr.f32.gmra.mrb[0].mxu0 %v994
    %v1469 = vpop.f32.mrb[0].mxu0
    %v1470 = vadd.f32 %v1381, %v1469
    %v1471 = vpop.f32.mrb[0].mxu0
    %1472 = vmatprep.mubr.f32.mxu0 0.0
    %1473 = vmatmul.mubr.f32.gmra.mrb[0].mxu0 %v997
    %v1474 = vpop.f32.mrb[0].mxu0
    %v1475 = vadd.f32 %v1381, %v1474
    %v1476 = vpop.f32.mrb[0].mxu0
    %1477 = vmatprep.mubr.f32.mxu0 0.0
    %1478 = vmatmul.mubr.f32.gmra.mrb[0].mxu0 %v1000
    %v1479 = vpop.f32.mrb[0].mxu0
    %v1480 = vadd.f32 %v1381, %v1479
    %v1481 = vpop.f32.mrb[0].mxu0
    %1482 = vmatprep.mubr.f32.mxu0 0.0
    %1483 = vmatmul.mubr.f32.gmra.mrb[0].mxu0 %v1003
    %v1484 = vpop.f32.mrb[0].mxu0
    %v1485 = vadd.f32 %v1381, %v1484
    %v1486 = vpop.f32.mrb[0].mxu0
    %1487 = vdwg.mxu0
    %1488 = vst.msk [vmem:[%s597] sm:$0xff] %vm222, %v1450
    %1489 = vst.msk [vmem:[%s597 + $0x8] sm:$0xff] %vm222, %v1455
    %1490 = vst.msk [vmem:[%s597 + $0x10] sm:$0xff] %vm222, %v1460
    %1491 = vst.msk [vmem:[%s597 + $0x18] sm:$0xff] %vm222, %v1465
    %1492 = vst.msk [vmem:[%s597 + $0x20] sm:$0xff] %vm222, %v1470
    %1493 = vst.msk [vmem:[%s597 + $0x28] sm:$0xff] %vm222, %v1475
    %1494 = vst.msk [vmem:[%s597 + $0x30] sm:$0xff] %vm222, %v1480
    %1495 = vst.msk [vmem:[%s597 + $0x38] sm:$0xff] %vm222, %v1485
    %v1496 = vld [vmem:[#allocation11] sm:$0xff]
    %v1497 = vld [vmem:[#allocation11 + $0x8] sm:$0xff]
    %v1498 = vld [vmem:[#allocation11 + $0x10] sm:$0xff]
    %v1499 = vld [vmem:[#allocation11 + $0x18] sm:$0xff]
    %s1500 = scalar_lea.vmem [#allocation11], 32
    %v1501 = vld [vmem:[%s1500] sm:$0xff]
    %v1502 = vld [vmem:[%s1500 + $0x8] sm:$0xff]
    %v1503 = vld [vmem:[%s1500 + $0x10] sm:$0xff]
    %v1504 = vld [vmem:[%s1500 + $0x18] sm:$0xff]
    %s1505 = scalar_lea.vmem [#allocation11], 64
    %v1506 = vld [vmem:[%s1505] sm:$0xff]
    %v1507 = vld [vmem:[%s1505 + $0x8] sm:$0xff]
    %v1508 = vld [vmem:[%s1505 + $0x10] sm:$0xff]
    %v1509 = vld [vmem:[%s1505 + $0x18] sm:$0xff]
    %s1510 = scalar_lea.vmem [#allocation11], 96
    %v1511 = vld [vmem:[%s1510] sm:$0xff]
    %v1512 = vld [vmem:[%s1510 + $0x8] sm:$0xff]
    %v1513 = vld [vmem:[%s1510 + $0x10] sm:$0xff]
    %v1514 = vld [vmem:[%s1510 + $0x18] sm:$0xff]
    %1515 = vst.msk [vmem:[#allocation4] sm:$0xff] %vm222, 0.0
    %1516 = vst.msk [vmem:[#allocation5] sm:$0xff] %vm222, 0.0
    loop: start=0, step=1, limit=8
    $region57: #{predictor_forward.1} parent=1 // loop_pre_header
      _
    $region58: #{predictor_forward.1} parent=1 // loop_header
      %s1518 = sphi 0, %s1522
      %p1519 = scmp.ge.s32.totalorder %s1518, 8
    $region59: #{predictor_forward.1} parent=1 // loop_header_branch
      %1521 = sbr.rel (%p1519) target = $region63
    $region60: #{predictor_forward.1} parent=1 // loop_body
      %s1523 = smul.u32 %s1518, 8
      %v1524 = vld [vmem:[#allocation4] sm:$0xff]
      %v1525 = vld [vmem:[#allocation5] sm:$0xff]
      %s1526 = scalar_lea.vmem [#allocation2], %s1523
      %v1527 = vld [vmem:[%s1526] sm:$0xff]
      %v1529 = vsel %vm222, %v1524, 0
      %1531 = vmatprep.subr.mxu0 0.0
      %1532 = vmatpush1.msra.mxu0 %v1496
      %1533 = vmatprep.subr.mxu0 0.0
      %1534 = vmatpush1.msra.mxu0 %v1497
      %1535 = vmatprep.subr.mxu0 0.0
      %1536 = vmatpush1.msra.mxu0 %v1498
      %1537 = vmatprep.subr.mxu0 0.0
      %1538 = vmatpush1.msra.mxu0 %v1499
      %1539 = vmatprep.subr.mxu0 0.0
      %1540 = vmatpush1.msra.mxu0 0.0
      %1541 = vmatprep.subr.mxu0 0.0
      %1542 = vmatpush1.msra.mxu0 0.0
      %1543 = vmatprep.subr.mxu0 0.0
      %1544 = vmatpush1.msra.mxu0 0.0
      %1545 = vmatprep.subr.mxu0 0.0
      %1546 = vmatpush1.msra.mxu0 0.0
      %1547 = vmatprep.subr.mxu0 0.0
      %1548 = vmatpush1.msra.mxu0 0.0
      %1549 = vmatprep.subr.mxu0 0.0
      %1550 = vmatpush1.msra.mxu0 0.0
      %1551 = vmatprep.subr.mxu0 0.0
      %1552 = vmatpush1.msra.mxu0 0.0
      %1553 = vmatprep.subr.mxu0 0.0
      %1554 = vmatpush1.msra.mxu0 0.0
      %1555 = vmatprep.subr.mxu0 0.0
      %1556 = vmatpush1.msra.mxu0 0.0
      %1557 = vmatprep.subr.mxu0 0.0
      %1558 = vmatpush1.msra.mxu0 0.0
      %1559 = vmatprep.subr.mxu0 0.0
      %1560 = vmatpush1.msra.mxu0 0.0
      %1561 = vmatprep.subr.mxu0 0.0
      %1562 = vmatpush1.msra.mxu0 0.0
      %1563 = vmatprep.subr.mxu0 0.0
      %1564 = vmatpush1.msra.mxu0 0.0
      %1565 = vmatprep.subr.mxu0 0.0
      %1566 = vmatpush1.msra.mxu0 0.0
      %1567 = vmatprep.subr.mxu0 0.0
      %1568 = vmatpush1.msra.mxu0 0.0
      %1569 = vmatprep.subr.mxu0 0.0
      %1570 = vmatpush1.msra.mxu0 0.0
      %1571 = vmatprep.subr.mxu0 0.0
      %1572 = vmatpush1.msra.mxu0 0.0
      %1573 = vmatprep.subr.mxu0 0.0
      %1574 = vmatpush1.msra.mxu0 0.0
      %1575 = vmatprep.subr.mxu0 0.0
      %1576 = vmatpush1.msra.mxu0 0.0
      %1577 = vmatprep.subr.mxu0 0.0
      %1578 = vmatpush1.msra.mxu0 0.0
      %1579 = vmatprep.subr.mxu0 0.0
      %1580 = vmatpush1.msra.mxu0 0.0
      %1581 = vmatprep.subr.mxu0 0.0
      %1582 = vmatpush1.msra.mxu0 0.0
      %1583 = vmatprep.subr.mxu0 0.0
      %1584 = vmatpush1.msra.mxu0 0.0
      %1585 = vmatprep.subr.mxu0 0.0
      %1586 = vmatpush1.msra.mxu0 0.0
      %1587 = vmatprep.subr.mxu0 0.0
      %1588 = vmatpush1.msra.mxu0 0.0
      %1589 = vmatprep.subr.mxu0 0.0
      %1590 = vmatpush1.msra.mxu0 0.0
      %1591 = vmatprep.subr.mxu0 0.0
      %1592 = vmatpush1.msra.mxu0 0.0
      %1593 = vmatprep.subr.mxu0 0.0
      %1594 = vmatpush1.msra.mxu0 0.0
      %1595 = vmatprep.mubr.f32.mxu0 0.0
      %1596 = vmatmul.mubr.f32.gmra.mrb[0].mxu0 %v1529
      %v1597 = vpop.f32.mrb[0].mxu0
      %v1598 = vadd.f32 0.0, %v1597
      %v1599 = vpop.f32.mrb[0].mxu0
      %1600 = vdwg.mxu0
      %v1601 = vadd.f32 %v1527, %v1598
      %s1602 = sadd.s32 %s1523, 64
      %s1603 = scalar_lea.vmem [#allocation2], %s1602
      %v1604 = vld [vmem:[%s1603] sm:$0xff]
      %1605 = vmatprep.subr.mxu0 0.0
      %1606 = vmatpush1.msra.mxu0 %v1501
      %1607 = vmatprep.subr.mxu0 0.0
      %1608 = vmatpush1.msra.mxu0 %v1502
      %1609 = vmatprep.subr.mxu0 0.0
      %1610 = vmatpush1.msra.mxu0 %v1503
      %1611 = vmatprep.subr.mxu0 0.0
      %1612 = vmatpush1.msra.mxu0 %v1504
      %1613 = vmatprep.subr.mxu0 0.0
      %1614 = vmatpush1.msra.mxu0 0.0
      %1615 = vmatprep.subr.mxu0 0.0
      %1616 = vmatpush1.msra.mxu0 0.0
      %1617 = vmatprep.subr.mxu0 0.0
      %1618 = vmatpush1.msra.mxu0 0.0
      %1619 = vmatprep.subr.mxu0 0.0
      %1620 = vmatpush1.msra.mxu0 0.0
      %1621 = vmatprep.subr.mxu0 0.0
      %1622 = vmatpush1.msra.mxu0 0.0
      %1623 = vmatprep.subr.mxu0 0.0
      %1624 = vmatpush1.msra.mxu0 0.0
      %1625 = vmatprep.subr.mxu0 0.0
      %1626 = vmatpush1.msra.mxu0 0.0
      %1627 = vmatprep.subr.mxu0 0.0
      %1628 = vmatpush1.msra.mxu0 0.0
      %1629 = vmatprep.subr.mxu0 0.0
      %1630 = vmatpush1.msra.mxu0 0.0
      %1631 = vmatprep.subr.mxu0 0.0
      %1632 = vmatpush1.msra.mxu0 0.0
      %1633 = vmatprep.subr.mxu0 0.0
      %1634 = vmatpush1.msra.mxu0 0.0
      %1635 = vmatprep.subr.mxu0 0.0
      %1636 = vmatpush1.msra.mxu0 0.0
      %1637 = vmatprep.subr.mxu0 0.0
      %1638 = vmatpush1.msra.mxu0 0.0
      %1639 = vmatprep.subr.mxu0 0.0
      %1640 = vmatpush1.msra.mxu0 0.0
      %1641 = vmatprep.subr.mxu0 0.0
      %1642 = vmatpush1.msra.mxu0 0.0
      %1643 = vmatprep.subr.mxu0 0.0
      %1644 = vmatpush1.msra.mxu0 0.0
      %1645 = vmatprep.subr.mxu0 0.0
      %1646 = vmatpush1.msra.mxu0 0.0
      %1647 = vmatprep.subr.mxu0 0.0
      %1648 = vmatpush1.msra.mxu0 0.0
      %1649 = vmatprep.subr.mxu0 0.0
      %1650 = vmatpush1.msra.mxu0 0.0
      %1651 = vmatprep.subr.mxu0 0.0
      %1652 = vmatpush1.msra.mxu0 0.0
      %1653 = vmatprep.subr.mxu0 0.0
      %1654 = vmatpush1.msra.mxu0 0.0
      %1655 = vmatprep.subr.mxu0 0.0
      %1656 = vmatpush1.msra.mxu0 0.0
      %1657 = vmatprep.subr.mxu0 0.0
      %1658 = vmatpush1.msra.mxu0 0.0
      %1659 = vmatprep.subr.mxu0 0.0
      %1660 = vmatpush1.msra.mxu0 0.0
      %1661 = vmatprep.subr.mxu0 0.0
      %1662 = vmatpush1.msra.mxu0 0.0
      %1663 = vmatprep.subr.mxu0 0.0
      %1664 = vmatpush1.msra.mxu0 0.0
      %1665 = vmatprep.subr.mxu0 0.0
      %1666 = vmatpush1.msra.mxu0 0.0
      %1667 = vmatprep.subr.mxu0 0.0
      %1668 = vmatpush1.msra.mxu0 0.0
      %1669 = vmatprep.mubr.f32.mxu0 0.0
      %1670 = vmatmul.mubr.f32.gmra.mrb[0].mxu0 %v1529
      %v1671 = vpop.f32.mrb[0].mxu0
      %v1672 = vadd.f32 0.0, %v1671
      %v1673 = vpop.f32.mrb[0].mxu0
      %1674 = vdwg.mxu0
      %v1675 = vadd.f32 %v1604, %v1672
      %s1676 = sadd.s32 %s1523, 128
      %s1677 = scalar_lea.vmem [#allocation2], %s1676
      %v1678 = vld [vmem:[%s1677] sm:$0xff]
      %1679 = vmatprep.subr.mxu0 0.0
      %1680 = vmatpush1.msra.mxu0 %v1506
      %1681 = vmatprep.subr.mxu0 0.0
      %1682 = vmatpush1.msra.mxu0 %v1507
      %1683 = vmatprep.subr.mxu0 0.0
      %1684 = vmatpush1.msra.mxu0 %v1508
      %1685 = vmatprep.subr.mxu0 0.0
      %1686 = vmatpush1.msra.mxu0 %v1509
      %1687 = vmatprep.subr.mxu0 0.0
      %1688 = vmatpush1.msra.mxu0 0.0
      %1689 = vmatprep.subr.mxu0 0.0
      %1690 = vmatpush1.msra.mxu0 0.0
      %1691 = vmatprep.subr.mxu0 0.0
      %1692 = vmatpush1.msra.mxu0 0.0
      %1693 = vmatprep.subr.mxu0 0.0
      %1694 = vmatpush1.msra.mxu0 0.0
      %1695 = vmatprep.subr.mxu0 0.0
      %1696 = vmatpush1.msra.mxu0 0.0
      %1697 = vmatprep.subr.mxu0 0.0
      %1698 = vmatpush1.msra.mxu0 0.0
      %1699 = vmatprep.subr.mxu0 0.0
      %1700 = vmatpush1.msra.mxu0 0.0
      %1701 = vmatprep.subr.mxu0 0.0
      %1702 = vmatpush1.msra.mxu0 0.0
      %1703 = vmatprep.subr.mxu0 0.0
      %1704 = vmatpush1.msra.mxu0 0.0
      %1705 = vmatprep.subr.mxu0 0.0
      %1706 = vmatpush1.msra.mxu0 0.0
      %1707 = vmatprep.subr.mxu0 0.0
      %1708 = vmatpush1.msra.mxu0 0.0
      %1709 = vmatprep.subr.mxu0 0.0
      %1710 = vmatpush1.msra.mxu0 0.0
      %1711 = vmatprep.subr.mxu0 0.0
      %1712 = vmatpush1.msra.mxu0 0.0
      %1713 = vmatprep.subr.mxu0 0.0
      %1714 = vmatpush1.msra.mxu0 0.0
      %1715 = vmatprep.subr.mxu0 0.0
      %1716 = vmatpush1.msra.mxu0 0.0
      %1717 = vmatprep.subr.mxu0 0.0
      %1718 = vmatpush1.msra.mxu0 0.0
      %1719 = vmatprep.subr.mxu0 0.0
      %1720 = vmatpush1.msra.mxu0 0.0
      %1721 = vmatprep.subr.mxu0 0.0
      %1722 = vmatpush1.msra.mxu0 0.0
      %1723 = vmatprep.subr.mxu0 0.0
      %1724 = vmatpush1.msra.mxu0 0.0
      %1725 = vmatprep.subr.mxu0 0.0
      %1726 = vmatpush1.msra.mxu0 0.0
      %1727 = vmatprep.subr.mxu0 0.0
      %1728 = vmatpush1.msra.mxu0 0.0
      %1729 = vmatprep.subr.mxu0 0.0
      %1730 = vmatpush1.msra.mxu0 0.0
      %1731 = vmatprep.subr.mxu0 0.0
      %1732 = vmatpush1.msra.mxu0 0.0
      %1733 = vmatprep.subr.mxu0 0.0
      %1734 = vmatpush1.msra.mxu0 0.0
      %1735 = vmatprep.subr.mxu0 0.0
      %1736 = vmatpush1.msra.mxu0 0.0
      %1737 = vmatprep.subr.mxu0 0.0
      %1738 = vmatpush1.msra.mxu0 0.0
      %1739 = vmatprep.subr.mxu0 0.0
      %1740 = vmatpush1.msra.mxu0 0.0
      %1741 = vmatprep.subr.mxu0 0.0
      %1742 = vmatpush1.msra.mxu0 0.0
      %1743 = vmatprep.mubr.f32.mxu0 0.0
      %1744 = vmatmul.mubr.f32.gmra.mrb[0].mxu0 %v1529
      %v1745 = vpop.f32.mrb[0].mxu0
      %v1746 = vadd.f32 0.0, %v1745
      %v1747 = vpop.f32.mrb[0].mxu0
      %1748 = vdwg.mxu0
      %v1749 = vadd.f32 %v1678, %v1746
      %s1750 = sadd.s32 %s1523, 192
      %s1751 = scalar_lea.vmem [#allocation2], %s1750
      %v1752 = vld [vmem:[%s1751] sm:$0xff]
      %1753 = vmatprep.subr.mxu0 0.0
      %1754 = vmatpush1.msra.mxu0 %v1511
      %1755 = vmatprep.subr.mxu0 0.0
      %1756 = vmatpush1.msra.mxu0 %v1512
      %1757 = vmatprep.subr.mxu0 0.0
      %1758 = vmatpush1.msra.mxu0 %v1513
      %1759 = vmatprep.subr.mxu0 0.0
      %1760 = vmatpush1.msra.mxu0 %v1514
      %1761 = vmatprep.subr.mxu0 0.0
      %1762 = vmatpush1.msra.mxu0 0.0
      %1763 = vmatprep.subr.mxu0 0.0
      %1764 = vmatpush1.msra.mxu0 0.0
      %1765 = vmatprep.subr.mxu0 0.0
      %1766 = vmatpush1.msra.mxu0 0.0
      %1767 = vmatprep.subr.mxu0 0.0
      %1768 = vmatpush1.msra.mxu0 0.0
      %1769 = vmatprep.subr.mxu0 0.0
      %1770 = vmatpush1.msra.mxu0 0.0
      %1771 = vmatprep.subr.mxu0 0.0
      %1772 = vmatpush1.msra.mxu0 0.0
      %1773 = vmatprep.subr.mxu0 0.0
      %1774 = vmatpush1.msra.mxu0 0.0
      %1775 = vmatprep.subr.mxu0 0.0
      %1776 = vmatpush1.msra.mxu0 0.0
      %1777 = vmatprep.subr.mxu0 0.0
      %1778 = vmatpush1.msra.mxu0 0.0
      %1779 = vmatprep.subr.mxu0 0.0
      %1780 = vmatpush1.msra.mxu0 0.0
      %1781 = vmatprep.subr.mxu0 0.0
      %1782 = vmatpush1.msra.mxu0 0.0
      %1783 = vmatprep.subr.mxu0 0.0
      %1784 = vmatpush1.msra.mxu0 0.0
      %1785 = vmatprep.subr.mxu0 0.0
      %1786 = vmatpush1.msra.mxu0 0.0
      %1787 = vmatprep.subr.mxu0 0.0
      %1788 = vmatpush1.msra.mxu0 0.0
      %1789 = vmatprep.subr.mxu0 0.0
      %1790 = vmatpush1.msra.mxu0 0.0
      %1791 = vmatprep.subr.mxu0 0.0
      %1792 = vmatpush1.msra.mxu0 0.0
      %1793 = vmatprep.subr.mxu0 0.0
      %1794 = vmatpush1.msra.mxu0 0.0
      %1795 = vmatprep.subr.mxu0 0.0
      %1796 = vmatpush1.msra.mxu0 0.0
      %1797 = vmatprep.subr.mxu0 0.0
      %1798 = vmatpush1.msra.mxu0 0.0
      %1799 = vmatprep.subr.mxu0 0.0
      %1800 = vmatpush1.msra.mxu0 0.0
      %1801 = vmatprep.subr.mxu0 0.0
      %1802 = vmatpush1.msra.mxu0 0.0
      %1803 = vmatprep.subr.mxu0 0.0
      %1804 = vmatpush1.msra.mxu0 0.0
      %1805 = vmatprep.subr.mxu0 0.0
      %1806 = vmatpush1.msra.mxu0 0.0
      %1807 = vmatprep.subr.mxu0 0.0
      %1808 = vmatpush1.msra.mxu0 0.0
      %1809 = vmatprep.subr.mxu0 0.0
      %1810 = vmatpush1.msra.mxu0 0.0
      %1811 = vmatprep.subr.mxu0 0.0
      %1812 = vmatpush1.msra.mxu0 0.0
      %1813 = vmatprep.subr.mxu0 0.0
      %1814 = vmatpush1.msra.mxu0 0.0
      %1815 = vmatprep.subr.mxu0 0.0
      %1816 = vmatpush1.msra.mxu0 0.0
      %1817 = vmatprep.mubr.f32.mxu0 0.0
      %1818 = vmatmul.mubr.f32.gmra.mrb[0].mxu0 %v1529
      %v1819 = vpop.f32.mrb[0].mxu0
      %v1820 = vadd.f32 0.0, %v1819
      %v1821 = vpop.f32.mrb[0].mxu0
      %1822 = vdwg.mxu0
      %v1823 = vadd.f32 %v1752, %v1820
      %v1824 = vxor.u32 %v1601, 2147483648
      %v1825 = vmul.f32 %v1824, 1.442695
      %v1826 = vpow.pop %v1825
      %v1827 = vadd.f32 %v1826, 1.0
      %v1828 = vrcp.pop %v1827
      %v1829 = vmul.f32 1.0, %v1828
      %v1830 = vxor.u32 %v1675, 2147483648
      %v1831 = vmul.f32 %v1830, 1.442695
      %v1832 = vpow.pop %v1831
      %v1833 = vadd.f32 %v1832, 1.0
      %v1834 = vrcp.pop %v1833
      %v1835 = vmul.f32 1.0, %v1834
      %v1836 = vtanh.pop %v1749
      %v1837 = vxor.u32 %v1823, 2147483648
      %v1838 = vmul.f32 %v1837, 1.442695
      %v1839 = vpow.pop %v1838
      %v1840 = vadd.f32 %v1839, 1.0
      %v1841 = vrcp.pop %v1840
      %v1842 = vmul.f32 1.0, %v1841
      %v1843 = vmul.f32 %v1835, %v1525
      %v1844 = vmul.f32 %v1829, %v1836
      %v1845 = vadd.f32 %v1843, %v1844
      %v1846 = vtanh.pop %v1845
      %v1847 = vmul.f32 %v1842, %v1846
      %1848 = vst.msk [vmem:[#allocation5] sm:$0xff] %vm222, %v1845
      %1849 = vst.msk [vmem:[#allocation4] sm:$0xff] %vm222, %v1847
    $region61: #{predictor_forward.1} parent=1 // loop_footer
      %s1522 = sadd.s32 1, %s1518
    $region62: #{predictor_forward.1} parent=1 // loop_footer_branch
      %1517 = sbr.rel target = $region58
    $region63: #{predictor_forward.1} parent=1 // loop_exit
      _
    %v1850 = vld [vmem:[#allocation4] sm:$0xff]
    %v1851 = vld [vmem:[%s7] sm:$0xff]
    %v1852 = vld [vmem:[%s7 + $0x8] sm:$0xff]
    %v1853 = vld [vmem:[%s7 + $0x10] sm:$0xff]
    %v1854 = vld [vmem:[%s7 + $0x18] sm:$0xff]
    %v1855 = vld [vmem:[#allocation6] sm:$0x1]
    %v1857 = vlaneseq
    %v1858 = vshrl.u32 %v1857, 7
    %v1859 = vsub.s32 0, %v1858
    %v1860 = vrot.slane %v1855, %v1859
    %v1863 = vsel %vm222, %v1850, 0
    %1865 = vmatprep.subr.mxu0 0.0
    %1866 = vmatpush1.msra.mxu0 %v1851
    %1867 = vmatprep.subr.mxu0 0.0
    %1868 = vmatpush1.msra.mxu0 %v1852
    %1869 = vmatprep.subr.mxu0 0.0
    %1870 = vmatpush1.msra.mxu0 %v1853
    %1871 = vmatprep.subr.mxu0 0.0
    %1872 = vmatpush1.msra.mxu0 %v1854
    %1873 = vmatprep.subr.mxu0 0.0
    %1874 = vmatpush1.msra.mxu0 0.0
    %1875 = vmatprep.subr.mxu0 0.0
    %1876 = vmatpush1.msra.mxu0 0.0
    %1877 = vmatprep.subr.mxu0 0.0
    %1878 = vmatpush1.msra.mxu0 0.0
    %1879 = vmatprep.subr.mxu0 0.0
    %1880 = vmatpush1.msra.mxu0 0.0
    %1881 = vmatprep.subr.mxu0 0.0
    %1882 = vmatpush1.msra.mxu0 0.0
    %1883 = vmatprep.subr.mxu0 0.0
    %1884 = vmatpush1.msra.mxu0 0.0
    %1885 = vmatprep.subr.mxu0 0.0
    %1886 = vmatpush1.msra.mxu0 0.0
    %1887 = vmatprep.subr.mxu0 0.0
    %1888 = vmatpush1.msra.mxu0 0.0
    %1889 = vmatprep.subr.mxu0 0.0
    %1890 = vmatpush1.msra.mxu0 0.0
    %1891 = vmatprep.subr.mxu0 0.0
    %1892 = vmatpush1.msra.mxu0 0.0
    %1893 = vmatprep.subr.mxu0 0.0
    %1894 = vmatpush1.msra.mxu0 0.0
    %1895 = vmatprep.subr.mxu0 0.0
    %1896 = vmatpush1.msra.mxu0 0.0
    %1897 = vmatprep.subr.mxu0 0.0
    %1898 = vmatpush1.msra.mxu0 0.0
    %1899 = vmatprep.subr.mxu0 0.0
    %1900 = vmatpush1.msra.mxu0 0.0
    %1901 = vmatprep.subr.mxu0 0.0
    %1902 = vmatpush1.msra.mxu0 0.0
    %1903 = vmatprep.subr.mxu0 0.0
    %1904 = vmatpush1.msra.mxu0 0.0
    %1905 = vmatprep.subr.mxu0 0.0
    %1906 = vmatpush1.msra.mxu0 0.0
    %1907 = vmatprep.subr.mxu0 0.0
    %1908 = vmatpush1.msra.mxu0 0.0
    %1909 = vmatprep.subr.mxu0 0.0
    %1910 = vmatpush1.msra.mxu0 0.0
    %1911 = vmatprep.subr.mxu0 0.0
    %1912 = vmatpush1.msra.mxu0 0.0
    %1913 = vmatprep.subr.mxu0 0.0
    %1914 = vmatpush1.msra.mxu0 0.0
    %1915 = vmatprep.subr.mxu0 0.0
    %1916 = vmatpush1.msra.mxu0 0.0
    %1917 = vmatprep.subr.mxu0 0.0
    %1918 = vmatpush1.msra.mxu0 0.0
    %1919 = vmatprep.subr.mxu0 0.0
    %1920 = vmatpush1.msra.mxu0 0.0
    %1921 = vmatprep.subr.mxu0 0.0
    %1922 = vmatpush1.msra.mxu0 0.0
    %1923 = vmatprep.subr.mxu0 0.0
    %1924 = vmatpush1.msra.mxu0 0.0
    %1925 = vmatprep.subr.mxu0 0.0
    %1926 = vmatpush1.msra.mxu0 0.0
    %1927 = vmatprep.subr.mxu0 0.0
    %1928 = vmatpush1.msra.mxu0 0.0
    %1929 = vmatprep.mubr.f32.mxu0 0.0
    %1930 = vmatmul.mubr.f32.gmra.mrb[0].mxu0 %v1863
    %v1931 = vpop.f32.mrb[0].mxu0
    %v1932 = vadd.f32 %v1860, %v1931
    %v1933 = vpop.f32.mrb[0].mxu0
    %1934 = vdwg.mxu0
    %vm1935 = vcmask 7168
    %1936 = vst.msk [vmem:[%s9] sm:$0xff] %vm1935, %v1932
    // Predicated region
    $region64: #{predictor_forward.1} parent=1 // pred_check
      _
    $region65: #{predictor_forward.1} parent=1 // pred_check_branch
      %1938 = sbr.rel (0) target = $region67
    $region66: #{predictor_forward.1} parent=1 // pred_region
      _
    $region67: #{predictor_forward.1} parent=1 // pred_fallthru
      _
    // Predicated region
    $region68: #{predictor_forward.1} parent=1 // pred_check
      _
    $region69: #{predictor_forward.1} parent=1 // pred_check_branch
      %1940 = sbr.rel (0) target = $region71
    $region70: #{predictor_forward.1} parent=1 // pred_region
      _
    $region71: #{predictor_forward.1} parent=1 // pred_fallthru
      _
    %1941 = vsyncpa [#allocation8], 1
    %1942 = vsyncpa [#allocation10], 1

</llo_original>
